<compile_context>
chip_gen: v7x
topology: tpu7x:2x2x1
jax: 0.10.0
libtpu: 0.0.40
codegen_flags: <defaults>
</compile_context>

<pallas_src>
import functools

import jax
import jax.numpy as jnp
from jax.experimental import pallas as pl
from jax.experimental.pallas import tpu as pltpu


def _make_matching_attention_kernel(approx_recip: bool):
    """Builds the kernel body; `approx_recip` selects EUP approx reciprocal."""

    def kernel(a_ref, p_ref,
               wg_ref, bg_ref,
               wa1_ref, wa2_ref, ba_ref,
               wp1_ref, wp2_ref, bp_ref,
               sa_ref, sp_ref):
        B, A_len, L = a_ref.shape          # (b_blk, A_len, l_pad)
        P_len = p_ref.shape[1]
        cdt = wg_ref.dtype                 # MXU operand dtype (f32 or bf16)
        f32 = jnp.float32

        A = a_ref[...]                     # (B, A_len, L) in cdt
        P = p_ref[...]                     # (B, P_len, L) in cdt

        # ---- G linear, batch-collapsed into the MXU M dimension ----
        GA = (jnp.dot(A.reshape(B * A_len, L), wg_ref[...],
                      preferred_element_type=f32)
              + bg_ref[...]).reshape(B, A_len, L)          # f32
        GA_c = GA.astype(cdt)

        # ---- attention core (batched dot_general, no explicit transposes) ----
        # W[b, p, a] = sum_l P[b, p, l] * GA[b, a, l]
        W = jnp.einsum("bpl,bal->bpa", P, GA_c, preferred_element_type=f32)
        W = W - jnp.max(W, axis=-1, keepdims=True)          # stable softmax, f32
        E = jnp.exp(W)
        inv = pl.reciprocal(jnp.sum(E, axis=-1, keepdims=True),
                            approx=approx_recip)
        Wn = E * inv                                        # (B, P_len, A_len)
        Wn_c = Wn.astype(cdt)

        MP = jnp.einsum("bpa,bal->bpl", Wn_c, GA_c,
                        preferred_element_type=f32)         # (B, P_len, L)
        MA = jnp.einsum("bpa,bpl->bal", Wn_c, P,
                        preferred_element_type=f32)         # (B, A_len, L)

        # ---- output FC layers, batch-collapsed; concat -> split weights ----
        GA2 = GA.reshape(B * A_len, L)
        MA2 = MA.reshape(B * A_len, L)
        SA = (jnp.dot((MA2 - GA2).astype(cdt), wa1_ref[...],
                      preferred_element_type=f32)
              + jnp.dot((MA2 * GA2).astype(cdt), wa2_ref[...],
                        preferred_element_type=f32)
              + ba_ref[...])
        SA = jnp.maximum(SA, 0.0)

        P2 = P.astype(f32).reshape(B * P_len, L)
        MP2 = MP.reshape(B * P_len, L)
        SP = (jnp.dot((MP2 - P2).astype(cdt), wp1_ref[...],
                      preferred_element_type=f32)
              + jnp.dot((MP2 * P2).astype(cdt), wp2_ref[...],
                        preferred_element_type=f32)
              + bp_ref[...])
        SP = jnp.maximum(SP, 0.0)

        sa_ref[...] = SA.reshape(B, A_len, L).astype(sa_ref.dtype)
        sp_ref[...] = SP.reshape(B, P_len, L).astype(sp_ref.dtype)

    return kernel


def _pick_b_blk(bs, a_len, p_len, target_rows=256):
    """Largest divisor of bs s.t. the collapsed row dim stays ~target_rows while
    keeping >=2 grid steps (so v7x's two TensorCores both get work)."""
    best = 1
    for d in range(1, bs + 1):
        if bs % d:
            continue
        if d * max(a_len, p_len) > target_rows:
            continue
        if bs >= 2 and bs // d < 2:
            continue
        best = d
    return best


def matching_attention(A, P, params, *, b_blk=None, compute_dtype=None):
    """A: (bs, A_len, l), P: (bs, P_len, l).  Returns (SA, SP).

    compute_dtype: dtype for MXU operands (e.g. jnp.bfloat16 on v6e/v7x);
    accumulation and softmax stay in f32.  Defaults to A.dtype.
    """
    bs, A_len, l = A.shape
    P_len = P.shape[1]
    out_dtype = A.dtype
    cdt = jnp.dtype(compute_dtype) if compute_dtype is not None else jnp.dtype(A.dtype)

    wg, bg, wfca, bfca, wfcp, bfcp = (params[k] for k in
                                      ("wg", "bg", "wfca", "bfca", "wfcp", "bfcp"))

    # ---- lane-dense feature padding: pad l up to a multiple of 128 ----
    l_pad = ((l + 127) // 128) * 128
    pad = l_pad - l

    def pad_mat(w):   # (l, l) -> (l_pad, l_pad), zero padded
        return jnp.pad(w, ((0, pad), (0, pad))).astype(cdt)

    def pad_vec(b):   # (l,) -> (1, l_pad), zero padded, kept in f32
        return jnp.pad(b, ((0, pad),)).reshape(1, l_pad).astype(jnp.float32)

    # PyTorch Linear weights are (out, in); pre-transpose so kernel does x @ W.
    # The 2l->l fc weights are split into two (l, l) halves (concat-free kernel).
    wg_t = pad_mat(wg.T)
    wa1 = pad_mat(wfca[:, :l].T)     # acts on (MA - GA)
    wa2 = pad_mat(wfca[:, l:].T)     # acts on (MA * GA)
    wp1 = pad_mat(wfcp[:, :l].T)     # acts on (MP - P)
    wp2 = pad_mat(wfcp[:, l:].T)     # acts on (MP * P)
    bg2, ba2, bp2 = pad_vec(bg), pad_vec(bfca), pad_vec(bfcp)

    A_p = jnp.pad(A, ((0, 0), (0, 0), (0, pad))).astype(cdt)
    P_p = jnp.pad(P, ((0, 0), (0, 0), (0, pad))).astype(cdt)

    # ---- batch blocking ----
    if b_blk is None:
        b_blk = _pick_b_blk(bs, A_len, P_len)
    assert bs % b_blk == 0, f"b_blk={b_blk} must divide bs={bs}"
    n_blocks = bs // b_blk

    wspec = pl.BlockSpec((l_pad, l_pad), lambda b: (0, 0))
    bspec = pl.BlockSpec((1, l_pad), lambda b: (0, 0))

    grid_spec = pltpu.PrefetchScalarGridSpec(
        num_scalar_prefetch=0,
        grid=(n_blocks,),
        in_specs=[
            pl.BlockSpec((b_blk, A_len, l_pad), lambda b: (b, 0, 0)),   # A
            pl.BlockSpec((b_blk, P_len, l_pad), lambda b: (b, 0, 0)),   # P
            wspec, bspec,                                               # G
            wspec, wspec, bspec,                                        # fca
            wspec, wspec, bspec,                                        # fcp
        ],
        out_specs=[
            pl.BlockSpec((b_blk, A_len, l_pad), lambda b: (b, 0, 0)),   # SA
            pl.BlockSpec((b_blk, P_len, l_pad), lambda b: (b, 0, 0)),   # SP
        ],
    )

    # Advisory cost estimate so XLA schedules the custom call sensibly.
    itemsize = jnp.dtype(cdt).itemsize
    flops = 2 * bs * (A_len * l_pad * l_pad          # G
                      + 3 * P_len * A_len * l_pad    # W, MP, MA
                      + 2 * A_len * l_pad * l_pad    # fca (two halves)
                      + 2 * P_len * l_pad * l_pad)   # fcp (two halves)
    bytes_accessed = int(
        bs * (A_len + P_len) * l_pad * itemsize                       # A, P in
        + bs * (A_len + P_len) * l_pad * jnp.dtype(out_dtype).itemsize  # SA, SP out
        + 5 * l_pad * l_pad * itemsize + 3 * l_pad * 4)               # weights + biases
    cost = pl.CostEstimate(flops=flops,
                           transcendentals=bs * P_len * A_len,
                           bytes_accessed=bytes_accessed)

    kernel = _make_matching_attention_kernel(
        approx_recip=(cdt == jnp.bfloat16))

    sa, sp = pl.pallas_call(
        kernel,
        out_shape=(
            jax.ShapeDtypeStruct((bs, A_len, l_pad), out_dtype),
            jax.ShapeDtypeStruct((bs, P_len, l_pad), out_dtype),
        ),
        grid_spec=grid_spec,
        compiler_params=pltpu.CompilerParams(
            dimension_semantics=("parallel",)),
        cost_estimate=cost,
    )(A_p, P_p, wg_t, bg2, wa1, wa2, ba2, wp1, wp2, bp2)

    if pad:
        sa = sa[:, :, :l]
        sp = sp[:, :, :l]
    return sa, sp


def matching_attention_ref(A, P, params):
    """Pure-JAX reference mirroring the PyTorch forward exactly."""
    wg, bg, wfca, bfca, wfcp, bfcp = (params[k] for k in
                                      ("wg", "bg", "wfca", "bfca", "wfcp", "bfcp"))
    GA = A @ wg.T + bg                                  # (bs, A_len, l)
    W = jnp.einsum("bpl,bal->bpa", P, GA)               # (bs, P_len, A_len)
    W = jax.nn.softmax(W, axis=-1)
    MP = jnp.einsum("bpa,bal->bpl", W, GA)              # (bs, P_len, l)
    MA = jnp.einsum("bpa,bpl->bal", W, P)               # (bs, A_len, l)
    SA = jnp.concatenate([MA - GA, MA * GA], axis=2) @ wfca.T + bfca
    SP = jnp.concatenate([MP - P, MP * P], axis=2) @ wfcp.T + bfcp
    return jnp.maximum(SA, 0.0), jnp.maximum(SP, 0.0)


if __name__ == "__main__":
    bs, A_len, P_len, l = 4, 8, 16, 32

    key = jax.random.PRNGKey(0)
    ks = jax.random.split(key, 8)
    A = jax.random.normal(ks[0], (bs, A_len, l), jnp.float32)
    P = jax.random.normal(ks[1], (bs, P_len, l), jnp.float32)

    # Deterministic synthetic parameters (PyTorch Linear layout: (out, in)).
    scale = 0.05
    params = {
        "wg":   scale * jax.random.normal(ks[2], (l, l), jnp.float32),
        "bg":   scale * jax.random.normal(ks[3], (l,), jnp.float32),
        "wfca": scale * jax.random.normal(ks[4], (l, 2 * l), jnp.float32),
        "bfca": scale * jax.random.normal(ks[5], (l,), jnp.float32),
        "wfcp": scale * jax.random.normal(ks[6], (l, 2 * l), jnp.float32),
        "bfcp": scale * jax.random.normal(ks[7], (l,), jnp.float32),
    }

    sa_ref, sp_ref = matching_attention_ref(A, P, params)

    # f32 path (bit-close to the reference).
    sa, sp = matching_attention(A, P, params)
    jax.block_until_ready((sa, sp))
    assert sa.shape == (bs, A_len, l) and sp.shape == (bs, P_len, l)
    assert jnp.allclose(sa, sa_ref, atol=2e-4, rtol=2e-4)
    assert jnp.allclose(sp, sp_ref, atol=2e-4, rtol=2e-4)

    # bf16 MXU path (v6e/v7x throughput): f32 accumulation, looser tolerance.
    sa_bf, sp_bf = matching_attention(A, P, params, compute_dtype=jnp.bfloat16)
    jax.block_until_ready((sa_bf, sp_bf))
    assert jnp.allclose(sa_bf, sa_ref, atol=5e-2, rtol=5e-2)
    assert jnp.allclose(sp_bf, sp_ref, atol=5e-2, rtol=5e-2)

    print("KERNEL_OK")
</pallas_src>

<mosaic_0001>
module attributes {stable_mosaic.version = 11 : i64} {
  func.func @kernel(%arg0: i32, %arg1: memref<2x8x128xf32, #tpu.memory_space<vmem>>, %arg2: memref<2x16x128xf32, #tpu.memory_space<vmem>>, %arg3: memref<128x128xf32, #tpu.memory_space<vmem>>, %arg4: memref<1x128xf32, #tpu.memory_space<vmem>>, %arg5: memref<128x128xf32, #tpu.memory_space<vmem>>, %arg6: memref<128x128xf32, #tpu.memory_space<vmem>>, %arg7: memref<1x128xf32, #tpu.memory_space<vmem>>, %arg8: memref<128x128xf32, #tpu.memory_space<vmem>>, %arg9: memref<128x128xf32, #tpu.memory_space<vmem>>, %arg10: memref<1x128xf32, #tpu.memory_space<vmem>>, %arg11: memref<2x8x128xf32, #tpu.memory_space<vmem>>, %arg12: memref<2x16x128xf32, #tpu.memory_space<vmem>>) attributes {dimension_semantics = [#tpu.dimension_semantics<parallel>], iteration_bounds = array<i64: 2>, scalar_prefetch = 0 : i64, scratch_operands = 0 : i64, tpu.core_type = #tpu.core_type<tc>, window_params = [{transform_indices = @transform_0, window_bounds = array<i64: 2, 8, 128>}, {transform_indices = @transform_1, window_bounds = array<i64: 2, 16, 128>}, {pipeline_mode = #tpu.pipeline_mode<synchronous>, transform_indices = @transform_2, window_bounds = array<i64: 128, 128>}, {pipeline_mode = #tpu.pipeline_mode<synchronous>, transform_indices = @transform_3, window_bounds = array<i64: 1, 128>}, {pipeline_mode = #tpu.pipeline_mode<synchronous>, transform_indices = @transform_4, window_bounds = array<i64: 128, 128>}, {pipeline_mode = #tpu.pipeline_mode<synchronous>, transform_indices = @transform_5, window_bounds = array<i64: 128, 128>}, {pipeline_mode = #tpu.pipeline_mode<synchronous>, transform_indices = @transform_6, window_bounds = array<i64: 1, 128>}, {pipeline_mode = #tpu.pipeline_mode<synchronous>, transform_indices = @transform_7, window_bounds = array<i64: 128, 128>}, {pipeline_mode = #tpu.pipeline_mode<synchronous>, transform_indices = @transform_8, window_bounds = array<i64: 128, 128>}, {pipeline_mode = #tpu.pipeline_mode<synchronous>, transform_indices = @transform_9, window_bounds = array<i64: 1, 128>}, {transform_indices = @transform_10, window_bounds = array<i64: 2, 8, 128>}, {transform_indices = @transform_11, window_bounds = array<i64: 2, 16, 128>}]} {
    %c0 = arith.constant 0 : index
    %c0_0 = arith.constant 0 : index
    %c0_1 = arith.constant 0 : index
    %0 = vector.load %arg1[%c0, %c0_0, %c0_1] : memref<2x8x128xf32, #tpu.memory_space<vmem>>, vector<2x8x128xf32>
    %c0_2 = arith.constant 0 : index
    %c0_3 = arith.constant 0 : index
    %c0_4 = arith.constant 0 : index
    %1 = vector.load %arg2[%c0_2, %c0_3, %c0_4] : memref<2x16x128xf32, #tpu.memory_space<vmem>>, vector<2x16x128xf32>
    %2 = vector.shape_cast %0 : vector<2x8x128xf32> to vector<16x128xf32>
    %c0_5 = arith.constant 0 : index
    %c0_6 = arith.constant 0 : index
    %3 = vector.load %arg3[%c0_5, %c0_6] : memref<128x128xf32, #tpu.memory_space<vmem>>, vector<128x128xf32>
    %cst = arith.constant dense<0.000000e+00> : vector<16x128xf32>
    %4 = tpu.matmul %2, %3, %cst {dimension_numbers = #tpu.dot_dimension_numbers<[1], [0], [0], [1], [0, 0, 1, 1], [], []>} : vector<16x128xf32>, vector<128x128xf32>, vector<16x128xf32> -> vector<16x128xf32>
    %c0_7 = arith.constant 0 : index
    %c0_8 = arith.constant 0 : index
    %5 = vector.load %arg4[%c0_7, %c0_8] : memref<1x128xf32, #tpu.memory_space<vmem>>, vector<1x128xf32>
    %6 = vector.broadcast %5 : vector<1x128xf32> to vector<16x128xf32>
    %7 = arith.addf %4, %6 : vector<16x128xf32>
    %8 = vector.shape_cast %7 : vector<16x128xf32> to vector<2x8x128xf32>
    "tpu.trace_start"() <{level = 10 : i32, message = "bpl,bal->bpa"}> : () -> ()
    %cst_9 = arith.constant dense<0.000000e+00> : vector<2x16x8xf32>
    %9 = tpu.matmul %1, %8, %cst_9 {dimension_numbers = #tpu.dot_dimension_numbers<[2], [2], [1], [1], [0, 0, 0, 1, 1, 1], [0], [0]>} : vector<2x16x128xf32>, vector<2x8x128xf32>, vector<2x16x8xf32> -> vector<2x16x8xf32>
    "tpu.trace_stop"() : () -> ()
    %cst_10 = arith.constant dense<0xFF800000> : vector<2x16xf32>
    %10 = vector.multi_reduction <maximumf>, %9, %cst_10 [2] : vector<2x16x8xf32> to vector<2x16xf32>
    %11 = vector.shape_cast %10 : vector<2x16xf32> to vector<2x16x1xf32>
    %12 = vector.broadcast %11 : vector<2x16x1xf32> to vector<2x16x8xf32>
    %13 = arith.subf %9, %12 : vector<2x16x8xf32>
    %14 = math.exp %13 : vector<2x16x8xf32>
    %cst_11 = arith.constant dense<0.000000e+00> : vector<2x16xf32>
    %15 = vector.multi_reduction <add>, %14, %cst_11 [2] : vector<2x16x8xf32> to vector<2x16xf32>
    %16 = vector.shape_cast %15 : vector<2x16xf32> to vector<2x16x1xf32>
    %17 = tpu.reciprocal %16 : vector<2x16x1xf32> -> vector<2x16x1xf32>
    %18 = vector.broadcast %17 : vector<2x16x1xf32> to vector<2x16x8xf32>
    %19 = arith.mulf %14, %18 : vector<2x16x8xf32>
    "tpu.trace_start"() <{level = 10 : i32, message = "bpa,bal->bpl"}> : () -> ()
    %cst_12 = arith.constant dense<0.000000e+00> : vector<2x16x128xf32>
    %20 = tpu.matmul %19, %8, %cst_12 {dimension_numbers = #tpu.dot_dimension_numbers<[2], [1], [1], [2], [0, 0, 0, 1, 1, 2], [0], [0]>} : vector<2x16x8xf32>, vector<2x8x128xf32>, vector<2x16x128xf32> -> vector<2x16x128xf32>
    "tpu.trace_stop"() : () -> ()
    "tpu.trace_start"() <{level = 10 : i32, message = "bpa,bpl->bal"}> : () -> ()
    %cst_13 = arith.constant dense<0.000000e+00> : vector<2x8x128xf32>
    %21 = tpu.matmul %19, %1, %cst_13 {dimension_numbers = #tpu.dot_dimension_numbers<[1], [1], [2], [2], [0, 0, 0, 2, 1, 2], [0], [0]>} : vector<2x16x8xf32>, vector<2x16x128xf32>, vector<2x8x128xf32> -> vector<2x8x128xf32>
    "tpu.trace_stop"() : () -> ()
    %22 = vector.shape_cast %8 : vector<2x8x128xf32> to vector<16x128xf32>
    %23 = vector.shape_cast %21 : vector<2x8x128xf32> to vector<16x128xf32>
    %24 = arith.subf %23, %22 : vector<16x128xf32>
    %c0_14 = arith.constant 0 : index
    %c0_15 = arith.constant 0 : index
    %25 = vector.load %arg5[%c0_14, %c0_15] : memref<128x128xf32, #tpu.memory_space<vmem>>, vector<128x128xf32>
    %cst_16 = arith.constant dense<0.000000e+00> : vector<16x128xf32>
    %26 = tpu.matmul %24, %25, %cst_16 {dimension_numbers = #tpu.dot_dimension_numbers<[1], [0], [0], [1], [0, 0, 1, 1], [], []>} : vector<16x128xf32>, vector<128x128xf32>, vector<16x128xf32> -> vector<16x128xf32>
    %27 = arith.mulf %23, %22 : vector<16x128xf32>
    %c0_17 = arith.constant 0 : index
    %c0_18 = arith.constant 0 : index
    %28 = vector.load %arg6[%c0_17, %c0_18] : memref<128x128xf32, #tpu.memory_space<vmem>>, vector<128x128xf32>
    %cst_19 = arith.constant dense<0.000000e+00> : vector<16x128xf32>
    %29 = tpu.matmul %27, %28, %cst_19 {dimension_numbers = #tpu.dot_dimension_numbers<[1], [0], [0], [1], [0, 0, 1, 1], [], []>} : vector<16x128xf32>, vector<128x128xf32>, vector<16x128xf32> -> vector<16x128xf32>
    %30 = arith.addf %26, %29 : vector<16x128xf32>
    %c0_20 = arith.constant 0 : index
    %c0_21 = arith.constant 0 : index
    %31 = vector.load %arg7[%c0_20, %c0_21] : memref<1x128xf32, #tpu.memory_space<vmem>>, vector<1x128xf32>
    %32 = vector.broadcast %31 : vector<1x128xf32> to vector<16x128xf32>
    %33 = arith.addf %30, %32 : vector<16x128xf32>
    %cst_22 = arith.constant 0.000000e+00 : f32
    %34 = vector.broadcast %cst_22 : f32 to vector<16x128xf32>
    %35 = arith.maximumf %33, %34 : vector<16x128xf32>
    %36 = vector.shape_cast %1 : vector<2x16x128xf32> to vector<32x128xf32>
    %37 = vector.shape_cast %20 : vector<2x16x128xf32> to vector<32x128xf32>
    %38 = arith.subf %37, %36 : vector<32x128xf32>
    %c0_23 = arith.constant 0 : index
    %c0_24 = arith.constant 0 : index
    %39 = vector.load %arg8[%c0_23, %c0_24] : memref<128x128xf32, #tpu.memory_space<vmem>>, vector<128x128xf32>
    %cst_25 = arith.constant dense<0.000000e+00> : vector<32x128xf32>
    %40 = tpu.matmul %38, %39, %cst_25 {dimension_numbers = #tpu.dot_dimension_numbers<[1], [0], [0], [1], [0, 0, 1, 1], [], []>} : vector<32x128xf32>, vector<128x128xf32>, vector<32x128xf32> -> vector<32x128xf32>
    %41 = arith.mulf %37, %36 : vector<32x128xf32>
    %c0_26 = arith.constant 0 : index
    %c0_27 = arith.constant 0 : index
    %42 = vector.load %arg9[%c0_26, %c0_27] : memref<128x128xf32, #tpu.memory_space<vmem>>, vector<128x128xf32>
    %cst_28 = arith.constant dense<0.000000e+00> : vector<32x128xf32>
    %43 = tpu.matmul %41, %42, %cst_28 {dimension_numbers = #tpu.dot_dimension_numbers<[1], [0], [0], [1], [0, 0, 1, 1], [], []>} : vector<32x128xf32>, vector<128x128xf32>, vector<32x128xf32> -> vector<32x128xf32>
    %44 = arith.addf %40, %43 : vector<32x128xf32>
    %c0_29 = arith.constant 0 : index
    %c0_30 = arith.constant 0 : index
    %45 = vector.load %arg10[%c0_29, %c0_30] : memref<1x128xf32, #tpu.memory_space<vmem>>, vector<1x128xf32>
    %46 = vector.broadcast %45 : vector<1x128xf32> to vector<32x128xf32>
    %47 = arith.addf %44, %46 : vector<32x128xf32>
    %cst_31 = arith.constant 0.000000e+00 : f32
    %48 = vector.broadcast %cst_31 : f32 to vector<32x128xf32>
    %49 = arith.maximumf %47, %48 : vector<32x128xf32>
    %50 = vector.shape_cast %35 : vector<16x128xf32> to vector<2x8x128xf32>
    %c0_32 = arith.constant 0 : index
    %c0_33 = arith.constant 0 : index
    %c0_34 = arith.constant 0 : index
    %51 = vector.load %arg11[%c0_32, %c0_33, %c0_34] : memref<2x8x128xf32, #tpu.memory_space<vmem>>, vector<2x8x128xf32>
    tpu.vector_store %arg11[%c0_32, %c0_33, %c0_34], %50 {strides = array<i32>} : memref<2x8x128xf32, #tpu.memory_space<vmem>>, vector<2x8x128xf32>,
    %52 = vector.shape_cast %49 : vector<32x128xf32> to vector<2x16x128xf32>
    %c0_35 = arith.constant 0 : index
    %c0_36 = arith.constant 0 : index
    %c0_37 = arith.constant 0 : index
    %53 = vector.load %arg12[%c0_35, %c0_36, %c0_37] : memref<2x16x128xf32, #tpu.memory_space<vmem>>, vector<2x16x128xf32>
    tpu.vector_store %arg12[%c0_35, %c0_36, %c0_37], %52 {strides = array<i32>} : memref<2x16x128xf32, #tpu.memory_space<vmem>>, vector<2x16x128xf32>,
    return
  }
  func.func @transform_0(%arg0: i32) -> (i32, i32, i32) {
    %c0_i32 = arith.constant 0 : i32
    %c0_i32_0 = arith.constant 0 : i32
    %c0_i32_1 = arith.constant 0 : i32
    return %arg0, %c0_i32, %c0_i32_0 : i32, i32, i32
  }
  func.func @transform_1(%arg0: i32) -> (i32, i32, i32) {
    %c0_i32 = arith.constant 0 : i32
    %c0_i32_0 = arith.constant 0 : i32
    %c0_i32_1 = arith.constant 0 : i32
    return %arg0, %c0_i32, %c0_i32_0 : i32, i32, i32
  }
  func.func @transform_2(%arg0: i32) -> (i32, i32) {
    %c0_i32 = arith.constant 0 : i32
    %c0_i32_0 = arith.constant 0 : i32
    %c0_i32_1 = arith.constant 0 : i32
    return %c0_i32, %c0_i32_0 : i32, i32
  }
  func.func @transform_3(%arg0: i32) -> (i32, i32) {
    %c0_i32 = arith.constant 0 : i32
    %c0_i32_0 = arith.constant 0 : i32
    %c0_i32_1 = arith.constant 0 : i32
    return %c0_i32, %c0_i32_0 : i32, i32
  }
  func.func @transform_4(%arg0: i32) -> (i32, i32) {
    %c0_i32 = arith.constant 0 : i32
    %c0_i32_0 = arith.constant 0 : i32
    %c0_i32_1 = arith.constant 0 : i32
    return %c0_i32, %c0_i32_0 : i32, i32
  }
  func.func @transform_5(%arg0: i32) -> (i32, i32) {
    %c0_i32 = arith.constant 0 : i32
    %c0_i32_0 = arith.constant 0 : i32
    %c0_i32_1 = arith.constant 0 : i32
    return %c0_i32, %c0_i32_0 : i32, i32
  }
  func.func @transform_6(%arg0: i32) -> (i32, i32) {
    %c0_i32 = arith.constant 0 : i32
    %c0_i32_0 = arith.constant 0 : i32
    %c0_i32_1 = arith.constant 0 : i32
    return %c0_i32, %c0_i32_0 : i32, i32
  }
  func.func @transform_7(%arg0: i32) -> (i32, i32) {
    %c0_i32 = arith.constant 0 : i32
    %c0_i32_0 = arith.constant 0 : i32
    %c0_i32_1 = arith.constant 0 : i32
    return %c0_i32, %c0_i32_0 : i32, i32
  }
  func.func @transform_8(%arg0: i32) -> (i32, i32) {
    %c0_i32 = arith.constant 0 : i32
    %c0_i32_0 = arith.constant 0 : i32
    %c0_i32_1 = arith.constant 0 : i32
    return %c0_i32, %c0_i32_0 : i32, i32
  }
  func.func @transform_9(%arg0: i32) -> (i32, i32) {
    %c0_i32 = arith.constant 0 : i32
    %c0_i32_0 = arith.constant 0 : i32
    %c0_i32_1 = arith.constant 0 : i32
    return %c0_i32, %c0_i32_0 : i32, i32
  }
  func.func @transform_10(%arg0: i32) -> (i32, i32, i32) {
    %c0_i32 = arith.constant 0 : i32
    %c0_i32_0 = arith.constant 0 : i32
    %c0_i32_1 = arith.constant 0 : i32
    return %arg0, %c0_i32, %c0_i32_0 : i32, i32, i32
  }
  func.func @transform_11(%arg0: i32) -> (i32, i32, i32) {
    %c0_i32 = arith.constant 0 : i32
    %c0_i32_0 = arith.constant 0 : i32
    %c0_i32_1 = arith.constant 0 : i32
    return %arg0, %c0_i32, %c0_i32_0 : i32, i32, i32
  }
}

</mosaic_0001>

<llo_original>
// kernel: tpu_custom_call.1
$region0: #{tpu_custom_call.1}
  #allocation0 [shape = 'u32[]', space=smem, size = 0x4, offset = 0x4, fixed_abs, tag = 'smem constant byte address 0x4 - core index']
  #allocation1 [shape = 'u32[144,128]{1,0:T(1,128)}', space=vmem, size = 0x12000, scoped, tag = 'internal scratch']
  %s0 = inlined_call_operand.hbm [shape: f32[4,8,128], index: 0, kind: input, shape index: {}]
  %s1 = inlined_call_operand.hbm [shape: f32[4,16,128], index: 1, kind: input, shape index: {}]
  %s2 = inlined_call_operand.hbm [shape: f32[128,128], index: 2, kind: input, shape index: {}]
  %s3 = inlined_call_operand.vmem [shape: f32[1,128], index: 3, kind: input, shape index: {}]
  %s4 = inlined_call_operand.hbm [shape: f32[128,128], index: 4, kind: input, shape index: {}]
  %s5 = inlined_call_operand.hbm [shape: f32[128,128], index: 5, kind: input, shape index: {}]
  %s6 = inlined_call_operand.vmem [shape: f32[1,128], index: 6, kind: input, shape index: {}]
  %s7 = inlined_call_operand.hbm [shape: f32[128,128], index: 7, kind: input, shape index: {}]
  %s8 = inlined_call_operand.hbm [shape: f32[128,128], index: 8, kind: input, shape index: {}]
  %s9 = inlined_call_operand.vmem [shape: f32[1,128], index: 9, kind: input, shape index: {}]
  %s10 = inlined_call_operand.hbm [shape: f32[4,8,128], index: 10, kind: output, shape index: {0}]
  %s11 = inlined_call_operand.hbm [shape: f32[4,16,128], index: 11, kind: output, shape index: {1}]
  %12 = xla_tuple %s10, %s11
  %s13 = sld [smem:[#allocation0]]
  $region109: #{tpu_custom_call.1} parent=0
    _
  %s15 = ssub.s32 1, %s13
  %s16 = scalar_select 0, %s15, %s13
  $region1: #{tpu_custom_call.1} parent=0
    #allocation2 [shape = 'u8[16384]{0}', space=vmem, size = 0x4000, scoped, tag = 'input window, operand 0']
    #allocation3 [shape = 's32[2]{0}', space=sflag, size = 0x8, scoped, tag = 'scoped memory for tpu_custom_call.1']
    #allocation4 [shape = 's32[2]{0}', space=sflag, size = 0x8, scoped, tag = 'scoped memory for tpu_custom_call.1']
    #allocation5 [shape = 'u8[32768]{0}', space=vmem, size = 0x8000, scoped, tag = 'input window, operand 1']
    #allocation6 [shape = 's32[2]{0}', space=sflag, size = 0x8, scoped, tag = 'scoped memory for tpu_custom_call.1']
    #allocation7 [shape = 'u8[65536]{0}', space=vmem, size = 0x10000, scoped, tag = 'input window, operand 2, single buffered']
    #allocation8 [shape = 'u8[65536]{0}', space=vmem, size = 0x10000, scoped, tag = 'input window, operand 4, single buffered']
    #allocation9 [shape = 's32[1]{0}', space=sflag, size = 0x4, scoped, tag = 'scoped memory for tpu_custom_call.1']
    #allocation10 [shape = 'u8[65536]{0}', space=vmem, size = 0x10000, scoped, tag = 'input window, operand 5, single buffered']
    #allocation11 [shape = 'u8[65536]{0}', space=vmem, size = 0x10000, scoped, tag = 'input window, operand 7, single buffered']
    #allocation12 [shape = 's32[1]{0}', space=sflag, size = 0x4, scoped, tag = 'scoped memory for tpu_custom_call.1']
    #allocation13 [shape = 'u8[65536]{0}', space=vmem, size = 0x10000, scoped, tag = 'input window, operand 8, single buffered']
    #allocation14 [shape = 'u8[16384]{0}', space=vmem, size = 0x4000, scoped, tag = 'output window, operand 0']
    #allocation15 [shape = 'u8[32768]{0}', space=vmem, size = 0x8000, scoped, tag = 'output window, operand 1']
    #allocation16 [shape = 's32[2]{0}', space=sflag, size = 0x8, scoped, tag = 'scoped memory for tpu_custom_call.1']
    %17 = vsyncpa [#allocation3], 0
    %s18 = scalar_lea.sflag [#allocation3], 1
    %19 = vsyncpa %s18, 0
    %20 = vsyncpa [#allocation6], 0
    %s21 = scalar_lea.sflag [#allocation6], 1
    %22 = vsyncpa %s21, 0
    %23 = vsyncpa [#allocation9], 0
    %24 = vsyncpa [#allocation12], 0
    %25 = vsyncpa [#allocation4], 0
    %s26 = scalar_lea.sflag [#allocation4], 1
    %27 = vsyncpa %s26, 0
    %28 = vsyncpa [#allocation16], 0
    %s29 = scalar_lea.sflag [#allocation16], 1
    %30 = vsyncpa %s29, 0
    loop: start=0, step=1, limit=4
    $region2: #{tpu_custom_call.1} parent=1 // loop_pre_header
      _
    $region3: #{tpu_custom_call.1} parent=1 // loop_header
      %s32 = sphi 0, %s36
      %p33 = scmp.ge.s32.totalorder %s32, 4
      %s42 = sphi 0, %s44
      %s45 = sphi 0, %s42
      %s46 = sphi 0, %s45
      %s62 = sphi 0, %s46
      %s68 = sphi 0, %s70
      %s71 = sphi 0, %s68
      %s72 = sphi 0, %s71
      %s88 = sphi 0, %s72
      %s92 = sphi 0, %s92
      %s94 = sphi 0, %s92
      %s95 = sphi 0, %s94
      %s109 = sphi 0, %s95
      %s113 = sphi 0, %s113
      %s115 = sphi 0, %s113
      %s116 = sphi 0, %s115
      %s130 = sphi 0, %s116
      %s134 = sphi 0, %s134
      %s136 = sphi 0, %s134
      %s137 = sphi 0, %s136
      %s151 = sphi 0, %s137
      %s155 = sphi 0, %s155
      %s157 = sphi 0, %s155
      %s158 = sphi 0, %s157
      %s172 = sphi 0, %s158
      %s176 = sphi 0, %s176
      %s178 = sphi 0, %s176
      %s179 = sphi 0, %s178
      %s193 = sphi 0, %s179
      %s197 = sphi 0, %s197
      %s199 = sphi 0, %s197
      %s200 = sphi 0, %s199
      %s214 = sphi 0, %s200
      %s218 = sphi 0, %s218
      %s220 = sphi 0, %s218
      %s221 = sphi 0, %s220
      %s235 = sphi 0, %s221
      %s239 = sphi 0, %s239
      %s241 = sphi 0, %s239
      %s242 = sphi 0, %s241
      %s256 = sphi 0, %s242
      %s262 = sphi 0, %s264
      %s265 = sphi 0, %s262
      %s266 = sphi 0, %s265
      %s282 = sphi 0, %s266
      %s288 = sphi 0, %s290
      %s291 = sphi 0, %s288
      %s292 = sphi 0, %s291
      %s308 = sphi 0, %s292
    $region4: #{tpu_custom_call.1} parent=1 // loop_header_branch
      %35 = sbr.rel (%p33) target = $region8
    $region5: #{tpu_custom_call.1} parent=1 // loop_body
      %s37 = ssub.s32 %s32, 1
      %s38 = ssub.s32 %s32, 2
      %s39 = sadd.s32 %s32, 1
      %s40 = ssub.s32 %s32, %s39
      %p41 = scmp.eq.s32.totalorder %s40, 0
      %s43 = sadd.s32 %s42, 1
      %s44 = scalar_select %p41, %s42, %s43
      %p47 = pneg %p41
      %p48 = scmp.eq.s32.totalorder %s32, 1
      %p49 = por %p47, %p48
      %p50 = scmp.ne.s32.totalorder %s42, %s45
      %p51 = scmp.eq.s32.totalorder %s32, 0
      %p52 = por %p50, %p51
      %p53 = scmp.ne.s32.totalorder %s42, %s45
      %p54 = scmp.eq.s32.totalorder %s37, 1
      %p55 = por %p53, %p54
      %p56 = scmp.ne.s32.totalorder %s45, %s46
      %p57 = scmp.eq.s32.totalorder %s37, 0
      %p58 = por %p56, %p57
      %p59 = scmp.ne.s32.totalorder %s45, %s46
      %p60 = scmp.eq.s32.totalorder %s38, 1
      %p61 = por %p59, %p60
      %p63 = scmp.ne.s32.totalorder %s46, %s62
      %p64 = scmp.eq.s32.totalorder %s38, 0
      %p65 = por %p63, %p64
      %s66 = ssub.s32 %s32, %s39
      %p67 = scmp.eq.s32.totalorder %s66, 0
      %s69 = sadd.s32 %s68, 1
      %s70 = scalar_select %p67, %s68, %s69
      %p73 = pneg %p67
      %p74 = scmp.eq.s32.totalorder %s32, 1
      %p75 = por %p73, %p74
      %p76 = scmp.ne.s32.totalorder %s68, %s71
      %p77 = scmp.eq.s32.totalorder %s32, 0
      %p78 = por %p76, %p77
      %p79 = scmp.ne.s32.totalorder %s68, %s71
      %p80 = scmp.eq.s32.totalorder %s37, 1
      %p81 = por %p79, %p80
      %p82 = scmp.ne.s32.totalorder %s71, %s72
      %p83 = scmp.eq.s32.totalorder %s37, 0
      %p84 = por %p82, %p83
      %p85 = scmp.ne.s32.totalorder %s71, %s72
      %p86 = scmp.eq.s32.totalorder %s38, 1
      %p87 = por %p85, %p86
      %p89 = scmp.ne.s32.totalorder %s72, %s88
      %p90 = scmp.eq.s32.totalorder %s38, 0
      %p91 = por %p89, %p90
      %s93 = sadd.s32 %s92, 1
      %p96 = scmp.eq.s32.totalorder %s32, 1
      %p97 = scmp.ne.s32.totalorder %s92, %s94
      %p98 = scmp.eq.s32.totalorder %s32, 0
      %p99 = por %p97, %p98
      %p100 = scmp.ne.s32.totalorder %s92, %s94
      %p101 = scmp.eq.s32.totalorder %s37, 1
      %p102 = por %p100, %p101
      %p103 = scmp.ne.s32.totalorder %s94, %s95
      %p104 = scmp.eq.s32.totalorder %s37, 0
      %p105 = por %p103, %p104
      %p106 = scmp.ne.s32.totalorder %s94, %s95
      %p107 = scmp.eq.s32.totalorder %s38, 1
      %p108 = por %p106, %p107
      %p110 = scmp.ne.s32.totalorder %s95, %s109
      %p111 = scmp.eq.s32.totalorder %s38, 0
      %p112 = por %p110, %p111
      %s114 = sadd.s32 %s113, 1
      %p117 = scmp.eq.s32.totalorder %s32, 1
      %p118 = scmp.ne.s32.totalorder %s113, %s115
      %p119 = scmp.eq.s32.totalorder %s32, 0
      %p120 = por %p118, %p119
      %p121 = scmp.ne.s32.totalorder %s113, %s115
      %p122 = scmp.eq.s32.totalorder %s37, 1
      %p123 = por %p121, %p122
      %p124 = scmp.ne.s32.totalorder %s115, %s116
      %p125 = scmp.eq.s32.totalorder %s37, 0
      %p126 = por %p124, %p125
      %p127 = scmp.ne.s32.totalorder %s115, %s116
      %p128 = scmp.eq.s32.totalorder %s38, 1
      %p129 = por %p127, %p128
      %p131 = scmp.ne.s32.totalorder %s116, %s130
      %p132 = scmp.eq.s32.totalorder %s38, 0
      %p133 = por %p131, %p132
      %s135 = sadd.s32 %s134, 1
      %p138 = scmp.eq.s32.totalorder %s32, 1
      %p139 = scmp.ne.s32.totalorder %s134, %s136
      %p140 = scmp.eq.s32.totalorder %s32, 0
      %p141 = por %p139, %p140
      %p142 = scmp.ne.s32.totalorder %s134, %s136
      %p143 = scmp.eq.s32.totalorder %s37, 1
      %p144 = por %p142, %p143
      %p145 = scmp.ne.s32.totalorder %s136, %s137
      %p146 = scmp.eq.s32.totalorder %s37, 0
      %p147 = por %p145, %p146
      %p148 = scmp.ne.s32.totalorder %s136, %s137
      %p149 = scmp.eq.s32.totalorder %s38, 1
      %p150 = por %p148, %p149
      %p152 = scmp.ne.s32.totalorder %s137, %s151
      %p153 = scmp.eq.s32.totalorder %s38, 0
      %p154 = por %p152, %p153
      %s156 = sadd.s32 %s155, 1
      %p159 = scmp.eq.s32.totalorder %s32, 1
      %p160 = scmp.ne.s32.totalorder %s155, %s157
      %p161 = scmp.eq.s32.totalorder %s32, 0
      %p162 = por %p160, %p161
      %p163 = scmp.ne.s32.totalorder %s155, %s157
      %p164 = scmp.eq.s32.totalorder %s37, 1
      %p165 = por %p163, %p164
      %p166 = scmp.ne.s32.totalorder %s157, %s158
      %p167 = scmp.eq.s32.totalorder %s37, 0
      %p168 = por %p166, %p167
      %p169 = scmp.ne.s32.totalorder %s157, %s158
      %p170 = scmp.eq.s32.totalorder %s38, 1
      %p171 = por %p169, %p170
      %p173 = scmp.ne.s32.totalorder %s158, %s172
      %p174 = scmp.eq.s32.totalorder %s38, 0
      %p175 = por %p173, %p174
      %s177 = sadd.s32 %s176, 1
      %p180 = scmp.eq.s32.totalorder %s32, 1
      %p181 = scmp.ne.s32.totalorder %s176, %s178
      %p182 = scmp.eq.s32.totalorder %s32, 0
      %p183 = por %p181, %p182
      %p184 = scmp.ne.s32.totalorder %s176, %s178
      %p185 = scmp.eq.s32.totalorder %s37, 1
      %p186 = por %p184, %p185
      %p187 = scmp.ne.s32.totalorder %s178, %s179
      %p188 = scmp.eq.s32.totalorder %s37, 0
      %p189 = por %p187, %p188
      %p190 = scmp.ne.s32.totalorder %s178, %s179
      %p191 = scmp.eq.s32.totalorder %s38, 1
      %p192 = por %p190, %p191
      %p194 = scmp.ne.s32.totalorder %s179, %s193
      %p195 = scmp.eq.s32.totalorder %s38, 0
      %p196 = por %p194, %p195
      %s198 = sadd.s32 %s197, 1
      %p201 = scmp.eq.s32.totalorder %s32, 1
      %p202 = scmp.ne.s32.totalorder %s197, %s199
      %p203 = scmp.eq.s32.totalorder %s32, 0
      %p204 = por %p202, %p203
      %p205 = scmp.ne.s32.totalorder %s197, %s199
      %p206 = scmp.eq.s32.totalorder %s37, 1
      %p207 = por %p205, %p206
      %p208 = scmp.ne.s32.totalorder %s199, %s200
      %p209 = scmp.eq.s32.totalorder %s37, 0
      %p210 = por %p208, %p209
      %p211 = scmp.ne.s32.totalorder %s199, %s200
      %p212 = scmp.eq.s32.totalorder %s38, 1
      %p213 = por %p211, %p212
      %p215 = scmp.ne.s32.totalorder %s200, %s214
      %p216 = scmp.eq.s32.totalorder %s38, 0
      %p217 = por %p215, %p216
      %s219 = sadd.s32 %s218, 1
      %p222 = scmp.eq.s32.totalorder %s32, 1
      %p223 = scmp.ne.s32.totalorder %s218, %s220
      %p224 = scmp.eq.s32.totalorder %s32, 0
      %p225 = por %p223, %p224
      %p226 = scmp.ne.s32.totalorder %s218, %s220
      %p227 = scmp.eq.s32.totalorder %s37, 1
      %p228 = por %p226, %p227
      %p229 = scmp.ne.s32.totalorder %s220, %s221
      %p230 = scmp.eq.s32.totalorder %s37, 0
      %p231 = por %p229, %p230
      %p232 = scmp.ne.s32.totalorder %s220, %s221
      %p233 = scmp.eq.s32.totalorder %s38, 1
      %p234 = por %p232, %p233
      %p236 = scmp.ne.s32.totalorder %s221, %s235
      %p237 = scmp.eq.s32.totalorder %s38, 0
      %p238 = por %p236, %p237
      %s240 = sadd.s32 %s239, 1
      %p243 = scmp.eq.s32.totalorder %s32, 1
      %p244 = scmp.ne.s32.totalorder %s239, %s241
      %p245 = scmp.eq.s32.totalorder %s32, 0
      %p246 = por %p244, %p245
      %p247 = scmp.ne.s32.totalorder %s239, %s241
      %p248 = scmp.eq.s32.totalorder %s37, 1
      %p249 = por %p247, %p248
      %p250 = scmp.ne.s32.totalorder %s241, %s242
      %p251 = scmp.eq.s32.totalorder %s37, 0
      %p252 = por %p250, %p251
      %p253 = scmp.ne.s32.totalorder %s241, %s242
      %p254 = scmp.eq.s32.totalorder %s38, 1
      %p255 = por %p253, %p254
      %p257 = scmp.ne.s32.totalorder %s242, %s256
      %p258 = scmp.eq.s32.totalorder %s38, 0
      %p259 = por %p257, %p258
      %s260 = ssub.s32 %s32, %s39
      %p261 = scmp.eq.s32.totalorder %s260, 0
      %s263 = sadd.s32 %s262, 1
      %s264 = scalar_select %p261, %s262, %s263
      %p267 = pneg %p261
      %p268 = scmp.eq.s32.totalorder %s32, 1
      %p269 = por %p267, %p268
      %p270 = scmp.ne.s32.totalorder %s262, %s265
      %p271 = scmp.eq.s32.totalorder %s32, 0
      %p272 = por %p270, %p271
      %p273 = scmp.ne.s32.totalorder %s262, %s265
      %p274 = scmp.eq.s32.totalorder %s37, 1
      %p275 = por %p273, %p274
      %p276 = scmp.ne.s32.totalorder %s265, %s266
      %p277 = scmp.eq.s32.totalorder %s37, 0
      %p278 = por %p276, %p277
      %p279 = scmp.ne.s32.totalorder %s265, %s266
      %p280 = scmp.eq.s32.totalorder %s38, 1
      %p281 = por %p279, %p280
      %p283 = scmp.ne.s32.totalorder %s266, %s282
      %p284 = scmp.eq.s32.totalorder %s38, 0
      %p285 = por %p283, %p284
      %s286 = ssub.s32 %s32, %s39
      %p287 = scmp.eq.s32.totalorder %s286, 0
      %s289 = sadd.s32 %s288, 1
      %s290 = scalar_select %p287, %s288, %s289
      %p293 = pneg %p287
      %p294 = scmp.eq.s32.totalorder %s32, 1
      %p295 = por %p293, %p294
      %p296 = scmp.ne.s32.totalorder %s288, %s291
      %p297 = scmp.eq.s32.totalorder %s32, 0
      %p298 = por %p296, %p297
      %p299 = scmp.ne.s32.totalorder %s288, %s291
      %p300 = scmp.eq.s32.totalorder %s37, 1
      %p301 = por %p299, %p300
      %p302 = scmp.ne.s32.totalorder %s291, %s292
      %p303 = scmp.eq.s32.totalorder %s37, 0
      %p304 = por %p302, %p303
      %p305 = scmp.ne.s32.totalorder %s291, %s292
      %p306 = scmp.eq.s32.totalorder %s38, 1
      %p307 = por %p305, %p306
      %p309 = scmp.ne.s32.totalorder %s292, %s308
      %p310 = scmp.eq.s32.totalorder %s38, 0
      %p311 = por %p309, %p310
      %p312 = scmp.le.s32.totalorder 1, %s32
      %p313 = scmp.lt.s32.totalorder %s32, 3
      %p314 = pnand %p312, %p313
      %p315 = pneg %p314
      // Predicated region
      $region9: #{tpu_custom_call.1} parent=5 // pred_check
        _
      $region10: #{tpu_custom_call.1} parent=5 // pred_check_branch
        %317 = sbr.rel (%p314) target = $region12
      $region11: #{tpu_custom_call.1} parent=5 // pred_region
        %s318 = ssub.s32 %s32, 1
        // Predicated region
        $region13: #{tpu_custom_call.1} parent=11 // pred_check
          %p319 = pneg %p105
        $region14: #{tpu_custom_call.1} parent=11 // pred_check_branch
          %321 = sbr.rel (%p319) target = $region16
        $region15: #{tpu_custom_call.1} parent=11 // pred_region
          %s323 = ssub.s32 2048, 2048
          %324 = vsyncadd [#allocation6], %s323
          %s325 = sshll.u32 [#allocation7], 4
          %s326 = int_to_ptr.vmem [resolvable:$true] %s325
          %331 = dma.hbm_to_vmem [thread:$0]  %s2, 2048, %s326, [#allocation6], 128, 128, 8
        $region16: #{tpu_custom_call.1} parent=11 // pred_fallthru
          _
        // Predicated region
        $region17: #{tpu_custom_call.1} parent=11 // pred_check
          %p332 = pneg %p126
        $region18: #{tpu_custom_call.1} parent=11 // pred_check_branch
          %334 = sbr.rel (%p332) target = $region20
        $region19: #{tpu_custom_call.1} parent=11 // pred_region
          _
        $region20: #{tpu_custom_call.1} parent=11 // pred_fallthru
          _
        // Predicated region
        $region21: #{tpu_custom_call.1} parent=11 // pred_check
          %p335 = pneg %p147
        $region22: #{tpu_custom_call.1} parent=11 // pred_check_branch
          %337 = sbr.rel (%p335) target = $region24
        $region23: #{tpu_custom_call.1} parent=11 // pred_region
          %s339 = ssub.s32 2048, 2048
          %340 = vsyncadd [#allocation9], %s339
          %s341 = sshll.u32 [#allocation8], 4
          %s342 = int_to_ptr.vmem [resolvable:$true] %s341
          %347 = dma.hbm_to_vmem [thread:$0]  %s4, 2048, %s342, [#allocation9], 128, 128, 8
        $region24: #{tpu_custom_call.1} parent=11 // pred_fallthru
          _
        // Predicated region
        $region25: #{tpu_custom_call.1} parent=11 // pred_check
          %p348 = pneg %p168
        $region26: #{tpu_custom_call.1} parent=11 // pred_check_branch
          %350 = sbr.rel (%p348) target = $region28
        $region27: #{tpu_custom_call.1} parent=11 // pred_region
          %s352 = ssub.s32 2048, 2048
          %353 = vsyncadd [#allocation9], %s352
          %s354 = sshll.u32 [#allocation10], 4
          %s355 = int_to_ptr.vmem [resolvable:$true] %s354
          %360 = dma.hbm_to_vmem [thread:$0]  %s5, 2048, %s355, [#allocation9], 128, 128, 8
        $region28: #{tpu_custom_call.1} parent=11 // pred_fallthru
          _
        // Predicated region
        $region29: #{tpu_custom_call.1} parent=11 // pred_check
          %p361 = pneg %p189
        $region30: #{tpu_custom_call.1} parent=11 // pred_check_branch
          %363 = sbr.rel (%p361) target = $region32
        $region31: #{tpu_custom_call.1} parent=11 // pred_region
          _
        $region32: #{tpu_custom_call.1} parent=11 // pred_fallthru
          _
        // Predicated region
        $region33: #{tpu_custom_call.1} parent=11 // pred_check
          %p364 = pneg %p210
        $region34: #{tpu_custom_call.1} parent=11 // pred_check_branch
          %366 = sbr.rel (%p364) target = $region36
        $region35: #{tpu_custom_call.1} parent=11 // pred_region
          %s368 = ssub.s32 2048, 2048
          %369 = vsyncadd [#allocation12], %s368
          %s370 = sshll.u32 [#allocation11], 4
          %s371 = int_to_ptr.vmem [resolvable:$true] %s370
          %376 = dma.hbm_to_vmem [thread:$0]  %s7, 2048, %s371, [#allocation12], 128, 128, 8
        $region36: #{tpu_custom_call.1} parent=11 // pred_fallthru
          _
        // Predicated region
        $region37: #{tpu_custom_call.1} parent=11 // pred_check
          %p377 = pneg %p231
        $region38: #{tpu_custom_call.1} parent=11 // pred_check_branch
          %379 = sbr.rel (%p377) target = $region40
        $region39: #{tpu_custom_call.1} parent=11 // pred_region
          %s381 = ssub.s32 2048, 2048
          %382 = vsyncadd [#allocation12], %s381
          %s383 = sshll.u32 [#allocation13], 4
          %s384 = int_to_ptr.vmem [resolvable:$true] %s383
          %389 = dma.hbm_to_vmem [thread:$0]  %s8, 2048, %s384, [#allocation12], 128, 128, 8
        $region40: #{tpu_custom_call.1} parent=11 // pred_fallthru
          _
        // Predicated region
        $region41: #{tpu_custom_call.1} parent=11 // pred_check
          %p390 = pneg %p252
        $region42: #{tpu_custom_call.1} parent=11 // pred_check_branch
          %392 = sbr.rel (%p390) target = $region44
        $region43: #{tpu_custom_call.1} parent=11 // pred_region
          _
        $region44: #{tpu_custom_call.1} parent=11 // pred_fallthru
          _
      $region12: #{tpu_custom_call.1} parent=5 // pred_fallthru
        _
      %p393 = scmp.lt.s32.totalorder %s32, 2
      // Predicated region
      $region45: #{tpu_custom_call.1} parent=5 // pred_check
        %p394 = pneg %p393
      $region46: #{tpu_custom_call.1} parent=5 // pred_check_branch
        %396 = sbr.rel (%p394) target = $region48
      $region47: #{tpu_custom_call.1} parent=5 // pred_region
        // Predicated region
        $region49: #{tpu_custom_call.1} parent=47 // pred_check
          %p397 = pneg %p52
        $region50: #{tpu_custom_call.1} parent=47 // pred_check_branch
          %399 = sbr.rel (%p397) target = $region52
        $region51: #{tpu_custom_call.1} parent=47 // pred_region
          %s400 = sand.u32 %s42, 1
          %s401 = scalar_lea.sflag [#allocation3], %s400
          %s402 = sand.u32 %s42, 1
          %s403 = smul.addr %s402, 16
          %s404 = scalar_lea.vmem [#allocation2], %s403
          %s405 = smul.u32 2, %s32
          %s407 = ssub.s32 256, 256
          %408 = vsyncadd %s401, %s407
          %s409 = smul.addr %s405, 128
          %s410 = scalar_lea.hbm %s0, %s409
          %s411 = sshll.u32 %s404, 4
          %s412 = int_to_ptr.vmem [resolvable:$true] %s411
          %417 = dma.hbm_to_vmem [thread:$0]  %s410, 256, %s412, %s401, 128, 128, 8
        $region52: #{tpu_custom_call.1} parent=47 // pred_fallthru
          _
        // Predicated region
        $region53: #{tpu_custom_call.1} parent=47 // pred_check
          %p418 = pneg %p78
        $region54: #{tpu_custom_call.1} parent=47 // pred_check_branch
          %420 = sbr.rel (%p418) target = $region56
        $region55: #{tpu_custom_call.1} parent=47 // pred_region
          %s421 = sand.u32 %s32, 1
          %s422 = scalar_lea.sflag [#allocation6], %s421
          %s423 = sand.u32 %s68, 1
          %s424 = smul.addr %s423, 32
          %s425 = scalar_lea.vmem [#allocation5], %s424
          %s426 = smul.u32 2, %s32
          %s428 = ssub.s32 512, 512
          %429 = vsyncadd %s422, %s428
          %s430 = smul.addr %s426, 2
          %s431 = smul.addr %s430, 128
          %s432 = scalar_lea.hbm %s1, %s431
          %s433 = sshll.u32 %s425, 4
          %s434 = int_to_ptr.vmem [resolvable:$true] %s433
          %439 = dma.hbm_to_vmem [thread:$0]  %s432, 512, %s434, %s422, 128, 128, 8
        $region56: #{tpu_custom_call.1} parent=47 // pred_fallthru
          _
      $region48: #{tpu_custom_call.1} parent=5 // pred_fallthru
        _
      %p440 = scmp.le.s32.totalorder 1, %s32
      %p441 = scmp.lt.s32.totalorder %s32, 3
      %p442 = pnand %p440, %p441
      %p443 = pneg %p442
      // Predicated region
      $region57: #{tpu_custom_call.1} parent=5 // pred_check
        _
      $region58: #{tpu_custom_call.1} parent=5 // pred_check_branch
        %445 = sbr.rel (%p442) target = $region60
      $region59: #{tpu_custom_call.1} parent=5 // pred_region
        %s446 = ssub.s32 %s32, 1
        %s447 = sand.u32 %s45, 1
        %s448 = scalar_lea.sflag [#allocation3], %s447
        %s449 = sand.u32 %s45, 1
        %s450 = smul.addr %s449, 16
        %s451 = scalar_lea.vmem [#allocation2], %s450
        // Predicated region
        $region61: #{tpu_custom_call.1} parent=59 // pred_check
          %p452 = pneg %p58
        $region62: #{tpu_custom_call.1} parent=59 // pred_check_branch
          %454 = sbr.rel (%p452) target = $region64
        $region63: #{tpu_custom_call.1} parent=59 // pred_region
          %455 = dma.done %s448, 256
        $region64: #{tpu_custom_call.1} parent=59 // pred_fallthru
          _
        %s456 = sand.u32 %s37, 1
        %s457 = scalar_lea.sflag [#allocation6], %s456
        %s458 = sand.u32 %s71, 1
        %s459 = smul.addr %s458, 32
        %s460 = scalar_lea.vmem [#allocation5], %s459
        // Predicated region
        $region65: #{tpu_custom_call.1} parent=59 // pred_check
          %p461 = pneg %p84
        $region66: #{tpu_custom_call.1} parent=59 // pred_check_branch
          %463 = sbr.rel (%p461) target = $region68
        $region67: #{tpu_custom_call.1} parent=59 // pred_region
          %464 = dma.done %s457, 512
        $region68: #{tpu_custom_call.1} parent=59 // pred_fallthru
          _
        // Predicated region
        $region69: #{tpu_custom_call.1} parent=59 // pred_check
          %p465 = pneg %p105
        $region70: #{tpu_custom_call.1} parent=59 // pred_check_branch
          %467 = sbr.rel (%p465) target = $region72
        $region71: #{tpu_custom_call.1} parent=59 // pred_region
          %468 = dma.done [#allocation6], 2048
        $region72: #{tpu_custom_call.1} parent=59 // pred_fallthru
          _
        // Predicated region
        $region73: #{tpu_custom_call.1} parent=59 // pred_check
          %p469 = pneg %p147
        $region74: #{tpu_custom_call.1} parent=59 // pred_check_branch
          %471 = sbr.rel (%p469) target = $region76
        $region75: #{tpu_custom_call.1} parent=59 // pred_region
          %472 = dma.done [#allocation9], 2048
        $region76: #{tpu_custom_call.1} parent=59 // pred_fallthru
          _
        // Predicated region
        $region77: #{tpu_custom_call.1} parent=59 // pred_check
          %p473 = pneg %p168
        $region78: #{tpu_custom_call.1} parent=59 // pred_check_branch
          %475 = sbr.rel (%p473) target = $region80
        $region79: #{tpu_custom_call.1} parent=59 // pred_region
          %476 = dma.done [#allocation9], 2048
        $region80: #{tpu_custom_call.1} parent=59 // pred_fallthru
          _
        // Predicated region
        $region81: #{tpu_custom_call.1} parent=59 // pred_check
          %p477 = pneg %p210
        $region82: #{tpu_custom_call.1} parent=59 // pred_check_branch
          %479 = sbr.rel (%p477) target = $region84
        $region83: #{tpu_custom_call.1} parent=59 // pred_region
          %480 = dma.done [#allocation12], 2048
        $region84: #{tpu_custom_call.1} parent=59 // pred_fallthru
          _
        // Predicated region
        $region85: #{tpu_custom_call.1} parent=59 // pred_check
          %p481 = pneg %p231
        $region86: #{tpu_custom_call.1} parent=59 // pred_check_branch
          %483 = sbr.rel (%p481) target = $region88
        $region87: #{tpu_custom_call.1} parent=59 // pred_region
          %484 = dma.done [#allocation12], 2048
        $region88: #{tpu_custom_call.1} parent=59 // pred_fallthru
          _
        %s485 = sand.u32 %s45, 1
        %s486 = scalar_lea.sflag [#allocation3], %s485
        %s487 = sand.u32 %s45, 1
        %s488 = smul.addr %s487, 16
        %s489 = scalar_lea.vmem [#allocation2], %s488
        %p490 = pneg %p58
        %p491 = pneg %p55
        %s492 = sand.u32 %s37, 1
        %s493 = scalar_lea.sflag [#allocation6], %s492
        %s494 = sand.u32 %s71, 1
        %s495 = smul.addr %s494, 32
        %s496 = scalar_lea.vmem [#allocation5], %s495
        %p497 = pneg %p84
        %p498 = pneg %p81
        %p499 = pneg %p105
        %p500 = pneg %p102
        %p501 = pneg %p126
        %p502 = pneg %p123
        %p503 = pneg %p147
        %p504 = pneg %p144
        %p505 = pneg %p168
        %p506 = pneg %p165
        %p507 = pneg %p189
        %p508 = pneg %p186
        %p509 = pneg %p210
        %p510 = pneg %p207
        %p511 = pneg %p231
        %p512 = pneg %p228
        %p513 = pneg %p252
        %p514 = pneg %p249
        %p515 = pneg %p278
        %p516 = pneg %p275
        %s517 = sand.u32 %s265, 1
        %s518 = scalar_lea.sflag [#allocation4], %s517
        %s519 = sand.u32 %s265, 1
        %s520 = smul.addr %s519, 16
        %s521 = scalar_lea.vmem [#allocation14], %s520
        %p522 = pneg %p304
        %p523 = pneg %p301
        %s524 = sand.u32 %s291, 1
        %s525 = scalar_lea.sflag [#allocation16], %s524
        %s526 = sand.u32 %s291, 1
        %s527 = smul.addr %s526, 32
        %s528 = scalar_lea.vmem [#allocation15], %s527
        %s529 = smul.u32 2, %s37
        %s530 = smul.u32 2, %s37
        %s531 = smul.u32 2, %s37
        %s532 = smul.u32 2, %s37
        %v533 = vld [vmem:[%s451] sm:$0xff]
        %v534 = vld [vmem:[%s451 + $0x8] sm:$0xff]
        %v535 = vld [vmem:[%s460] sm:$0xff]
        %v536 = vld [vmem:[%s460 + $0x8] sm:$0xff]
        %v537 = vld [vmem:[%s460 + $0x10] sm:$0xff]
        %v538 = vld [vmem:[%s460 + $0x18] sm:$0xff]
        %v539 = vld [vmem:[#allocation7] sm:$0xff]
        %v540 = vld [vmem:[#allocation7 + $0x8] sm:$0xff]
        %v541 = vld [vmem:[#allocation7 + $0x10] sm:$0xff]
        %v542 = vld [vmem:[#allocation7 + $0x18] sm:$0xff]
        %v543 = vld [vmem:[#allocation7 + $0x20] sm:$0xff]
        %v544 = vld [vmem:[#allocation7 + $0x28] sm:$0xff]
        %v545 = vld [vmem:[#allocation7 + $0x30] sm:$0xff]
        %v546 = vld [vmem:[#allocation7 + $0x38] sm:$0xff]
        %v547 = vld [vmem:[#allocation7 + $0x40] sm:$0xff]
        %v548 = vld [vmem:[#allocation7 + $0x48] sm:$0xff]
        %v549 = vld [vmem:[#allocation7 + $0x50] sm:$0xff]
        %v550 = vld [vmem:[#allocation7 + $0x58] sm:$0xff]
        %v551 = vld [vmem:[#allocation7 + $0x60] sm:$0xff]
        %v552 = vld [vmem:[#allocation7 + $0x68] sm:$0xff]
        %v553 = vld [vmem:[#allocation7 + $0x70] sm:$0xff]
        %v554 = vld [vmem:[#allocation7 + $0x78] sm:$0xff]
        %v555 = vld [vmem:[%s3] sm:$0x1]
        %v557 = vlaneseq
        %v558 = vshrl.u32 %v557, 7
        %v559 = vsub.s32 0, %v558
        %v560 = vrot.slane %v555, %v559
        %562 = vmatprep.subr.mxu0 0.0
        %563 = vmatpush1.msra.mxu0 %v539
        %564 = vmatprep.subr.mxu0 0.0
        %565 = vmatpush1.msra.mxu0 %v540
        %566 = vmatprep.subr.mxu0 0.0
        %567 = vmatpush1.msra.mxu0 %v541
        %568 = vmatprep.subr.mxu0 0.0
        %569 = vmatpush1.msra.mxu0 %v542
        %570 = vmatprep.subr.mxu0 0.0
        %571 = vmatpush1.msra.mxu0 %v543
        %572 = vmatprep.subr.mxu0 0.0
        %573 = vmatpush1.msra.mxu0 %v544
        %574 = vmatprep.subr.mxu0 0.0
        %575 = vmatpush1.msra.mxu0 %v545
        %576 = vmatprep.subr.mxu0 0.0
        %577 = vmatpush1.msra.mxu0 %v546
        %578 = vmatprep.subr.mxu0 0.0
        %579 = vmatpush1.msra.mxu0 %v547
        %580 = vmatprep.subr.mxu0 0.0
        %581 = vmatpush1.msra.mxu0 %v548
        %582 = vmatprep.subr.mxu0 0.0
        %583 = vmatpush1.msra.mxu0 %v549
        %584 = vmatprep.subr.mxu0 0.0
        %585 = vmatpush1.msra.mxu0 %v550
        %586 = vmatprep.subr.mxu0 0.0
        %587 = vmatpush1.msra.mxu0 %v551
        %588 = vmatprep.subr.mxu0 0.0
        %589 = vmatpush1.msra.mxu0 %v552
        %590 = vmatprep.subr.mxu0 0.0
        %591 = vmatpush1.msra.mxu0 %v553
        %592 = vmatprep.subr.mxu0 0.0
        %593 = vmatpush1.msra.mxu0 %v554
        %594 = vmatprep.subr.mxu0 0.0
        %595 = vmatpush1.msra.mxu0 0.0
        %596 = vmatprep.subr.mxu0 0.0
        %597 = vmatpush1.msra.mxu0 0.0
        %598 = vmatprep.subr.mxu0 0.0
        %599 = vmatpush1.msra.mxu0 0.0
        %600 = vmatprep.subr.mxu0 0.0
        %601 = vmatpush1.msra.mxu0 0.0
        %602 = vmatprep.subr.mxu0 0.0
        %603 = vmatpush1.msra.mxu0 0.0
        %604 = vmatprep.subr.mxu0 0.0
        %605 = vmatpush1.msra.mxu0 0.0
        %606 = vmatprep.subr.mxu0 0.0
        %607 = vmatpush1.msra.mxu0 0.0
        %608 = vmatprep.subr.mxu0 0.0
        %609 = vmatpush1.msra.mxu0 0.0
        %610 = vmatprep.subr.mxu0 0.0
        %611 = vmatpush1.msra.mxu0 0.0
        %612 = vmatprep.subr.mxu0 0.0
        %613 = vmatpush1.msra.mxu0 0.0
        %614 = vmatprep.subr.mxu0 0.0
        %615 = vmatpush1.msra.mxu0 0.0
        %616 = vmatprep.subr.mxu0 0.0
        %617 = vmatpush1.msra.mxu0 0.0
        %618 = vmatprep.subr.mxu0 0.0
        %619 = vmatpush1.msra.mxu0 0.0
        %620 = vmatprep.subr.mxu0 0.0
        %621 = vmatpush1.msra.mxu0 0.0
        %622 = vmatprep.subr.mxu0 0.0
        %623 = vmatpush1.msra.mxu0 0.0
        %624 = vmatprep.subr.mxu0 0.0
        %625 = vmatpush1.msra.mxu0 0.0
        %626 = vmatprep.mubr.f32.mxu0 0.0
        %627 = vmatmul.mubr.f32.gmra.mrb[0].mxu0 %v533
        %v628 = vpop.f32.mrb[0].mxu0
        %v629 = vadd.f32 %v560, %v628
        %v630 = vpop.f32.mrb[0].mxu0
        %631 = vmatprep.mubr.f32.mxu0 0.0
        %632 = vmatmul.mubr.f32.gmra.mrb[0].mxu0 %v534
        %v633 = vpop.f32.mrb[0].mxu0
        %v634 = vadd.f32 %v560, %v633
        %v635 = vpop.f32.mrb[0].mxu0
        %636 = vdwg.mxu0
        %637 = vmatprep.subr.mxu0 0.0
        %638 = vmatpush1.xpose.msra.mxu0 %v629
        %639 = vmatprep.subr.mxu0 0.0
        %640 = vmatpush1.xpose.msra.mxu0 0.0
        %641 = vmatprep.subr.mxu0 0.0
        %642 = vmatpush1.xpose.msra.mxu0 0.0
        %643 = vmatprep.subr.mxu0 0.0
        %644 = vmatpush1.xpose.msra.mxu0 0.0
        %645 = vmatprep.subr.mxu0 0.0
        %646 = vmatpush1.xpose.msra.mxu0 0.0
        %647 = vmatprep.subr.mxu0 0.0
        %648 = vmatpush1.xpose.msra.mxu0 0.0
        %649 = vmatprep.subr.mxu0 0.0
        %650 = vmatpush1.xpose.msra.mxu0 0.0
        %651 = vmatprep.subr.mxu0 0.0
        %652 = vmatpush1.xpose.msra.mxu0 0.0
        %653 = vmatprep.subr.mxu0 0.0
        %654 = vmatpush1.xpose.msra.mxu0 0.0
        %655 = vmatprep.subr.mxu0 0.0
        %656 = vmatpush1.xpose.msra.mxu0 0.0
        %657 = vmatprep.subr.mxu0 0.0
        %658 = vmatpush1.xpose.msra.mxu0 0.0
        %659 = vmatprep.subr.mxu0 0.0
        %660 = vmatpush1.xpose.msra.mxu0 0.0
        %661 = vmatprep.subr.mxu0 0.0
        %662 = vmatpush1.xpose.msra.mxu0 0.0
        %663 = vmatprep.subr.mxu0 0.0
        %664 = vmatpush1.xpose.msra.mxu0 0.0
        %665 = vmatprep.subr.mxu0 0.0
        %666 = vmatpush1.xpose.msra.mxu0 0.0
        %667 = vmatprep.subr.mxu0 0.0
        %668 = vmatpush1.xpose.msra.mxu0 0.0
        %669 = vmatprep.subr.mxu0 0.0
        %670 = vmatpush1.xpose.msra.mxu0 0.0
        %671 = vmatprep.subr.mxu0 0.0
        %672 = vmatpush1.xpose.msra.mxu0 0.0
        %673 = vmatprep.subr.mxu0 0.0
        %674 = vmatpush1.xpose.msra.mxu0 0.0
        %675 = vmatprep.subr.mxu0 0.0
        %676 = vmatpush1.xpose.msra.mxu0 0.0
        %677 = vmatprep.subr.mxu0 0.0
        %678 = vmatpush1.xpose.msra.mxu0 0.0
        %679 = vmatprep.subr.mxu0 0.0
        %680 = vmatpush1.xpose.msra.mxu0 0.0
        %681 = vmatprep.subr.mxu0 0.0
        %682 = vmatpush1.xpose.msra.mxu0 0.0
        %683 = vmatprep.subr.mxu0 0.0
        %684 = vmatpush1.xpose.msra.mxu0 0.0
        %685 = vmatprep.subr.mxu0 0.0
        %686 = vmatpush1.xpose.msra.mxu0 0.0
        %687 = vmatprep.subr.mxu0 0.0
        %688 = vmatpush1.xpose.msra.mxu0 0.0
        %689 = vmatprep.subr.mxu0 0.0
        %690 = vmatpush1.xpose.msra.mxu0 0.0
        %691 = vmatprep.subr.mxu0 0.0
        %692 = vmatpush1.xpose.msra.mxu0 0.0
        %693 = vmatprep.subr.mxu0 0.0
        %694 = vmatpush1.xpose.msra.mxu0 0.0
        %695 = vmatprep.subr.mxu0 0.0
        %696 = vmatpush1.xpose.msra.mxu0 0.0
        %697 = vmatprep.subr.mxu0 0.0
        %698 = vmatpush1.xpose.msra.mxu0 0.0
        %699 = vmatprep.subr.mxu0 0.0
        %700 = vmatpush1.xpose.msra.mxu0 0.0
        %701 = vmatprep.mubr.f32.mxu0 0.0
        %702 = vmatmul.mubr.f32.gmra.mrb[0].mxu0 %v535
        %v703 = vpop.f32.mrb[0].mxu0
        %v704 = vadd.f32 0.0, %v703
        %v705 = vpop.f32.mrb[0].mxu0
        %706 = vmatprep.mubr.f32.mxu0 0.0
        %707 = vmatmul.mubr.f32.gmra.mrb[0].mxu0 %v536
        %v708 = vpop.f32.mrb[0].mxu0
        %v709 = vadd.f32 0.0, %v708
        %v710 = vpop.f32.mrb[0].mxu0
        %711 = vdwg.mxu0
        %712 = vmatprep.subr.mxu0 0.0
        %713 = vmatpush1.xpose.msra.mxu0 %v634
        %714 = vmatprep.subr.mxu0 0.0
        %715 = vmatpush1.xpose.msra.mxu0 0.0
        %716 = vmatprep.subr.mxu0 0.0
        %717 = vmatpush1.xpose.msra.mxu0 0.0
        %718 = vmatprep.subr.mxu0 0.0
        %719 = vmatpush1.xpose.msra.mxu0 0.0
        %720 = vmatprep.subr.mxu0 0.0
        %721 = vmatpush1.xpose.msra.mxu0 0.0
        %722 = vmatprep.subr.mxu0 0.0
        %723 = vmatpush1.xpose.msra.mxu0 0.0
        %724 = vmatprep.subr.mxu0 0.0
        %725 = vmatpush1.xpose.msra.mxu0 0.0
        %726 = vmatprep.subr.mxu0 0.0
        %727 = vmatpush1.xpose.msra.mxu0 0.0
        %728 = vmatprep.subr.mxu0 0.0
        %729 = vmatpush1.xpose.msra.mxu0 0.0
        %730 = vmatprep.subr.mxu0 0.0
        %731 = vmatpush1.xpose.msra.mxu0 0.0
        %732 = vmatprep.subr.mxu0 0.0
        %733 = vmatpush1.xpose.msra.mxu0 0.0
        %734 = vmatprep.subr.mxu0 0.0
        %735 = vmatpush1.xpose.msra.mxu0 0.0
        %736 = vmatprep.subr.mxu0 0.0
        %737 = vmatpush1.xpose.msra.mxu0 0.0
        %738 = vmatprep.subr.mxu0 0.0
        %739 = vmatpush1.xpose.msra.mxu0 0.0
        %740 = vmatprep.subr.mxu0 0.0
        %741 = vmatpush1.xpose.msra.mxu0 0.0
        %742 = vmatprep.subr.mxu0 0.0
        %743 = vmatpush1.xpose.msra.mxu0 0.0
        %744 = vmatprep.subr.mxu0 0.0
        %745 = vmatpush1.xpose.msra.mxu0 0.0
        %746 = vmatprep.subr.mxu0 0.0
        %747 = vmatpush1.xpose.msra.mxu0 0.0
        %748 = vmatprep.subr.mxu0 0.0
        %749 = vmatpush1.xpose.msra.mxu0 0.0
        %750 = vmatprep.subr.mxu0 0.0
        %751 = vmatpush1.xpose.msra.mxu0 0.0
        %752 = vmatprep.subr.mxu0 0.0
        %753 = vmatpush1.xpose.msra.mxu0 0.0
        %754 = vmatprep.subr.mxu0 0.0
        %755 = vmatpush1.xpose.msra.mxu0 0.0
        %756 = vmatprep.subr.mxu0 0.0
        %757 = vmatpush1.xpose.msra.mxu0 0.0
        %758 = vmatprep.subr.mxu0 0.0
        %759 = vmatpush1.xpose.msra.mxu0 0.0
        %760 = vmatprep.subr.mxu0 0.0
        %761 = vmatpush1.xpose.msra.mxu0 0.0
        %762 = vmatprep.subr.mxu0 0.0
        %763 = vmatpush1.xpose.msra.mxu0 0.0
        %764 = vmatprep.subr.mxu0 0.0
        %765 = vmatpush1.xpose.msra.mxu0 0.0
        %766 = vmatprep.subr.mxu0 0.0
        %767 = vmatpush1.xpose.msra.mxu0 0.0
        %768 = vmatprep.subr.mxu0 0.0
        %769 = vmatpush1.xpose.msra.mxu0 0.0
        %770 = vmatprep.subr.mxu0 0.0
        %771 = vmatpush1.xpose.msra.mxu0 0.0
        %772 = vmatprep.subr.mxu0 0.0
        %773 = vmatpush1.xpose.msra.mxu0 0.0
        %774 = vmatprep.subr.mxu0 0.0
        %775 = vmatpush1.xpose.msra.mxu0 0.0
        %776 = vmatprep.mubr.f32.mxu0 0.0
        %777 = vmatmul.mubr.f32.gmra.mrb[0].mxu0 %v537
        %v778 = vpop.f32.mrb[0].mxu0
        %v779 = vadd.f32 0.0, %v778
        %v780 = vpop.f32.mrb[0].mxu0
        %781 = vmatprep.mubr.f32.mxu0 0.0
        %782 = vmatmul.mubr.f32.gmra.mrb[0].mxu0 %v538
        %v783 = vpop.f32.mrb[0].mxu0
        %v784 = vadd.f32 0.0, %v783
        %v785 = vpop.f32.mrb[0].mxu0
        %786 = vdwg.mxu0
        %vm787 = vcmask 64512
        %v788 = vsel %vm787, %v704, -inf
        %789 = vmax.xlane.f32.xlu0 %v788
        %v790 = vpop.xlane.xlu0 %789
        %v791 = vsel %vm787, %v709, -inf
        %792 = vmax.xlane.f32.xlu0 %v791
        %v793 = vpop.xlane.xlu0 %792
        %v794 = vsel %vm787, %v779, -inf
        %795 = vmax.xlane.f32.xlu0 %v794
        %v796 = vpop.xlane.xlu0 %795
        %v797 = vsel %vm787, %v784, -inf
        %798 = vmax.xlane.f32.xlu0 %v797
        %v799 = vpop.xlane.xlu0 %798
        %v800 = vsub.f32 %v704, %v790
        %v801 = vsub.f32 %v709, %v793
        %v802 = vsub.f32 %v779, %v796
        %v803 = vsub.f32 %v784, %v799
        %v804 = vmul.f32 %v800, 1.442695
        %v805 = vpow.pop %v804
        %v806 = vmul.f32 %v801, 1.442695
        %v807 = vpow.pop %v806
        %v808 = vmul.f32 %v802, 1.442695
        %v809 = vpow.pop %v808
        %v810 = vmul.f32 %v803, 1.442695
        %v811 = vpow.pop %v810
        %v812 = vsel %vm787, %v805, 0.0
        %813 = vadd.xlane.f32.xlu0 %v812
        %v814 = vpop.xlane.xlu0 %813
        %v815 = vsel %vm787, %v807, 0.0
        %816 = vadd.xlane.f32.xlu0 %v815
        %v817 = vpop.xlane.xlu0 %816
        %v818 = vsel %vm787, %v809, 0.0
        %819 = vadd.xlane.f32.xlu0 %v818
        %v820 = vpop.xlane.xlu0 %819
        %v821 = vsel %vm787, %v811, 0.0
        %822 = vadd.xlane.f32.xlu0 %v821
        %v823 = vpop.xlane.xlu0 %822
        %v824 = vrcp.pop %v814
        %v825 = vrcp.pop %v817
        %v826 = vrcp.pop %v820
        %v827 = vrcp.pop %v823
        %v828 = vmul.f32 %v805, %v824
        %v829 = vmul.f32 %v807, %v825
        %v830 = vmul.f32 %v809, %v826
        %v831 = vmul.f32 %v811, %v827
        %v833 = vsel %vm787, %v828, 0
        %v836 = vsel %vm787, %v829, 0
        %838 = vmatprep.subr.mxu0 0.0
        %839 = vmatpush1.msra.mxu0 %v629
        %840 = vmatprep.subr.mxu0 0.0
        %841 = vmatpush1.msra.mxu0 0.0
        %842 = vmatprep.subr.mxu0 0.0
        %843 = vmatpush1.msra.mxu0 0.0
        %844 = vmatprep.subr.mxu0 0.0
        %845 = vmatpush1.msra.mxu0 0.0
        %846 = vmatprep.subr.mxu0 0.0
        %847 = vmatpush1.msra.mxu0 0.0
        %848 = vmatprep.subr.mxu0 0.0
        %849 = vmatpush1.msra.mxu0 0.0
        %850 = vmatprep.subr.mxu0 0.0
        %851 = vmatpush1.msra.mxu0 0.0
        %852 = vmatprep.subr.mxu0 0.0
        %853 = vmatpush1.msra.mxu0 0.0
        %854 = vmatprep.subr.mxu0 0.0
        %855 = vmatpush1.msra.mxu0 0.0
        %856 = vmatprep.subr.mxu0 0.0
        %857 = vmatpush1.msra.mxu0 0.0
        %858 = vmatprep.subr.mxu0 0.0
        %859 = vmatpush1.msra.mxu0 0.0
        %860 = vmatprep.subr.mxu0 0.0
        %861 = vmatpush1.msra.mxu0 0.0
        %862 = vmatprep.subr.mxu0 0.0
        %863 = vmatpush1.msra.mxu0 0.0
        %864 = vmatprep.subr.mxu0 0.0
        %865 = vmatpush1.msra.mxu0 0.0
        %866 = vmatprep.subr.mxu0 0.0
        %867 = vmatpush1.msra.mxu0 0.0
        %868 = vmatprep.subr.mxu0 0.0
        %869 = vmatpush1.msra.mxu0 0.0
        %870 = vmatprep.subr.mxu0 0.0
        %871 = vmatpush1.msra.mxu0 0.0
        %872 = vmatprep.subr.mxu0 0.0
        %873 = vmatpush1.msra.mxu0 0.0
        %874 = vmatprep.subr.mxu0 0.0
        %875 = vmatpush1.msra.mxu0 0.0
        %876 = vmatprep.subr.mxu0 0.0
        %877 = vmatpush1.msra.mxu0 0.0
        %878 = vmatprep.subr.mxu0 0.0
        %879 = vmatpush1.msra.mxu0 0.0
        %880 = vmatprep.subr.mxu0 0.0
        %881 = vmatpush1.msra.mxu0 0.0
        %882 = vmatprep.subr.mxu0 0.0
        %883 = vmatpush1.msra.mxu0 0.0
        %884 = vmatprep.subr.mxu0 0.0
        %885 = vmatpush1.msra.mxu0 0.0
        %886 = vmatprep.subr.mxu0 0.0
        %887 = vmatpush1.msra.mxu0 0.0
        %888 = vmatprep.subr.mxu0 0.0
        %889 = vmatpush1.msra.mxu0 0.0
        %890 = vmatprep.subr.mxu0 0.0
        %891 = vmatpush1.msra.mxu0 0.0
        %892 = vmatprep.subr.mxu0 0.0
        %893 = vmatpush1.msra.mxu0 0.0
        %894 = vmatprep.subr.mxu0 0.0
        %895 = vmatpush1.msra.mxu0 0.0
        %896 = vmatprep.subr.mxu0 0.0
        %897 = vmatpush1.msra.mxu0 0.0
        %898 = vmatprep.subr.mxu0 0.0
        %899 = vmatpush1.msra.mxu0 0.0
        %900 = vmatprep.subr.mxu0 0.0
        %901 = vmatpush1.msra.mxu0 0.0
        %902 = vmatprep.mubr.f32.mxu0 0.0
        %903 = vmatmul.mubr.f32.gmra.mrb[0].mxu0 %v833
        %v904 = vpop.f32.mrb[0].mxu0
        %v905 = vadd.f32 0.0, %v904
        %v906 = vpop.f32.mrb[0].mxu0
        %907 = vmatprep.mubr.f32.mxu0 0.0
        %908 = vmatmul.mubr.f32.gmra.mrb[0].mxu0 %v836
        %v909 = vpop.f32.mrb[0].mxu0
        %v910 = vadd.f32 0.0, %v909
        %v911 = vpop.f32.mrb[0].mxu0
        %912 = vdwg.mxu0
        %v914 = vsel %vm787, %v830, 0
        %v917 = vsel %vm787, %v831, 0
        %919 = vmatprep.subr.mxu0 0.0
        %920 = vmatpush1.msra.mxu0 %v634
        %921 = vmatprep.subr.mxu0 0.0
        %922 = vmatpush1.msra.mxu0 0.0
        %923 = vmatprep.subr.mxu0 0.0
        %924 = vmatpush1.msra.mxu0 0.0
        %925 = vmatprep.subr.mxu0 0.0
        %926 = vmatpush1.msra.mxu0 0.0
        %927 = vmatprep.subr.mxu0 0.0
        %928 = vmatpush1.msra.mxu0 0.0
        %929 = vmatprep.subr.mxu0 0.0
        %930 = vmatpush1.msra.mxu0 0.0
        %931 = vmatprep.subr.mxu0 0.0
        %932 = vmatpush1.msra.mxu0 0.0
        %933 = vmatprep.subr.mxu0 0.0
        %934 = vmatpush1.msra.mxu0 0.0
        %935 = vmatprep.subr.mxu0 0.0
        %936 = vmatpush1.msra.mxu0 0.0
        %937 = vmatprep.subr.mxu0 0.0
        %938 = vmatpush1.msra.mxu0 0.0
        %939 = vmatprep.subr.mxu0 0.0
        %940 = vmatpush1.msra.mxu0 0.0
        %941 = vmatprep.subr.mxu0 0.0
        %942 = vmatpush1.msra.mxu0 0.0
        %943 = vmatprep.subr.mxu0 0.0
        %944 = vmatpush1.msra.mxu0 0.0
        %945 = vmatprep.subr.mxu0 0.0
        %946 = vmatpush1.msra.mxu0 0.0
        %947 = vmatprep.subr.mxu0 0.0
        %948 = vmatpush1.msra.mxu0 0.0
        %949 = vmatprep.subr.mxu0 0.0
        %950 = vmatpush1.msra.mxu0 0.0
        %951 = vmatprep.subr.mxu0 0.0
        %952 = vmatpush1.msra.mxu0 0.0
        %953 = vmatprep.subr.mxu0 0.0
        %954 = vmatpush1.msra.mxu0 0.0
        %955 = vmatprep.subr.mxu0 0.0
        %956 = vmatpush1.msra.mxu0 0.0
        %957 = vmatprep.subr.mxu0 0.0
        %958 = vmatpush1.msra.mxu0 0.0
        %959 = vmatprep.subr.mxu0 0.0
        %960 = vmatpush1.msra.mxu0 0.0
        %961 = vmatprep.subr.mxu0 0.0
        %962 = vmatpush1.msra.mxu0 0.0
        %963 = vmatprep.subr.mxu0 0.0
        %964 = vmatpush1.msra.mxu0 0.0
        %965 = vmatprep.subr.mxu0 0.0
        %966 = vmatpush1.msra.mxu0 0.0
        %967 = vmatprep.subr.mxu0 0.0
        %968 = vmatpush1.msra.mxu0 0.0
        %969 = vmatprep.subr.mxu0 0.0
        %970 = vmatpush1.msra.mxu0 0.0
        %971 = vmatprep.subr.mxu0 0.0
        %972 = vmatpush1.msra.mxu0 0.0
        %973 = vmatprep.subr.mxu0 0.0
        %974 = vmatpush1.msra.mxu0 0.0
        %975 = vmatprep.subr.mxu0 0.0
        %976 = vmatpush1.msra.mxu0 0.0
        %977 = vmatprep.subr.mxu0 0.0
        %978 = vmatpush1.msra.mxu0 0.0
        %979 = vmatprep.subr.mxu0 0.0
        %980 = vmatpush1.msra.mxu0 0.0
        %981 = vmatprep.subr.mxu0 0.0
        %982 = vmatpush1.msra.mxu0 0.0
        %983 = vmatprep.mubr.f32.mxu0 0.0
        %984 = vmatmul.mubr.f32.gmra.mrb[0].mxu0 %v914
        %v985 = vpop.f32.mrb[0].mxu0
        %v986 = vadd.f32 0.0, %v985
        %v987 = vpop.f32.mrb[0].mxu0
        %988 = vmatprep.mubr.f32.mxu0 0.0
        %989 = vmatmul.mubr.f32.gmra.mrb[0].mxu0 %v917
        %v990 = vpop.f32.mrb[0].mxu0
        %v991 = vadd.f32 0.0, %v990
        %v992 = vpop.f32.mrb[0].mxu0
        %993 = vdwg.mxu0
        %994 = vxpose.xlu0.b32.start [1/16] %v828, 128
        %995 = vxpose.xlu0.b32.cont [2/16] %v829, 128
        %996 = vxpose.xlu0.b32.cont [3/16] 0.0, 128
        %997 = vxpose.xlu0.b32.cont [4/16] 0.0, 128
        %998 = vxpose.xlu0.b32.cont [5/16] 0.0, 128
        %999 = vxpose.xlu0.b32.cont [6/16] 0.0, 128
        %1000 = vxpose.xlu0.b32.cont [7/16] 0.0, 128
        %1001 = vxpose.xlu0.b32.cont [8/16] 0.0, 128
        %1002 = vxpose.xlu0.b32.cont [9/16] 0.0, 128
        %1003 = vxpose.xlu0.b32.cont [10/16] 0.0, 128
        %1004 = vxpose.xlu0.b32.cont [11/16] 0.0, 128
        %1005 = vxpose.xlu0.b32.cont [12/16] 0.0, 128
        %1006 = vxpose.xlu0.b32.cont [13/16] 0.0, 128
        %1007 = vxpose.xlu0.b32.cont [14/16] 0.0, 128
        %1008 = vxpose.xlu0.b32.cont [15/16] 0.0, 128
        %1009 = vxpose.xlu0.b32.end [16/16] 0.0, 128
        %v1010 = vpop.trf.xlu0
        %v1011 = vpop.trf.xlu0
        %v1012 = vpop.trf.xlu0
        %v1013 = vpop.trf.xlu0
        %v1014 = vpop.trf.xlu0
        %v1015 = vpop.trf.xlu0
        %v1016 = vpop.trf.xlu0
        %v1017 = vpop.trf.xlu0
        %v1018 = vpop.trf.xlu0
        %v1019 = vpop.trf.xlu0
        %v1020 = vpop.trf.xlu0
        %v1021 = vpop.trf.xlu0
        %v1022 = vpop.trf.xlu0
        %v1023 = vpop.trf.xlu0
        %v1024 = vpop.trf.xlu0
        %v1025 = vpop.trf.xlu0
        %vm1026 = vcmask 130048
        %v1028 = vsel %vm1026, %v1010, 0
        %1030 = vmatprep.subr.mxu0 0.0
        %1031 = vmatpush1.msra.mxu0 %v535
        %1032 = vmatprep.subr.mxu0 0.0
        %1033 = vmatpush1.msra.mxu0 %v536
        %1034 = vmatprep.subr.mxu0 0.0
        %1035 = vmatpush1.msra.mxu0 0.0
        %1036 = vmatprep.subr.mxu0 0.0
        %1037 = vmatpush1.msra.mxu0 0.0
        %1038 = vmatprep.subr.mxu0 0.0
        %1039 = vmatpush1.msra.mxu0 0.0
        %1040 = vmatprep.subr.mxu0 0.0
        %1041 = vmatpush1.msra.mxu0 0.0
        %1042 = vmatprep.subr.mxu0 0.0
        %1043 = vmatpush1.msra.mxu0 0.0
        %1044 = vmatprep.subr.mxu0 0.0
        %1045 = vmatpush1.msra.mxu0 0.0
        %1046 = vmatprep.subr.mxu0 0.0
        %1047 = vmatpush1.msra.mxu0 0.0
        %1048 = vmatprep.subr.mxu0 0.0
        %1049 = vmatpush1.msra.mxu0 0.0
        %1050 = vmatprep.subr.mxu0 0.0
        %1051 = vmatpush1.msra.mxu0 0.0
        %1052 = vmatprep.subr.mxu0 0.0
        %1053 = vmatpush1.msra.mxu0 0.0
        %1054 = vmatprep.subr.mxu0 0.0
        %1055 = vmatpush1.msra.mxu0 0.0
        %1056 = vmatprep.subr.mxu0 0.0
        %1057 = vmatpush1.msra.mxu0 0.0
        %1058 = vmatprep.subr.mxu0 0.0
        %1059 = vmatpush1.msra.mxu0 0.0
        %1060 = vmatprep.subr.mxu0 0.0
        %1061 = vmatpush1.msra.mxu0 0.0
        %1062 = vmatprep.subr.mxu0 0.0
        %1063 = vmatpush1.msra.mxu0 0.0
        %1064 = vmatprep.subr.mxu0 0.0
        %1065 = vmatpush1.msra.mxu0 0.0
        %1066 = vmatprep.subr.mxu0 0.0
        %1067 = vmatpush1.msra.mxu0 0.0
        %1068 = vmatprep.subr.mxu0 0.0
        %1069 = vmatpush1.msra.mxu0 0.0
        %1070 = vmatprep.subr.mxu0 0.0
        %1071 = vmatpush1.msra.mxu0 0.0
        %1072 = vmatprep.subr.mxu0 0.0
        %1073 = vmatpush1.msra.mxu0 0.0
        %1074 = vmatprep.subr.mxu0 0.0
        %1075 = vmatpush1.msra.mxu0 0.0
        %1076 = vmatprep.subr.mxu0 0.0
        %1077 = vmatpush1.msra.mxu0 0.0
        %1078 = vmatprep.subr.mxu0 0.0
        %1079 = vmatpush1.msra.mxu0 0.0
        %1080 = vmatprep.subr.mxu0 0.0
        %1081 = vmatpush1.msra.mxu0 0.0
        %1082 = vmatprep.subr.mxu0 0.0
        %1083 = vmatpush1.msra.mxu0 0.0
        %1084 = vmatprep.subr.mxu0 0.0
        %1085 = vmatpush1.msra.mxu0 0.0
        %1086 = vmatprep.subr.mxu0 0.0
        %1087 = vmatpush1.msra.mxu0 0.0
        %1088 = vmatprep.subr.mxu0 0.0
        %1089 = vmatpush1.msra.mxu0 0.0
        %1090 = vmatprep.subr.mxu0 0.0
        %1091 = vmatpush1.msra.mxu0 0.0
        %1092 = vmatprep.subr.mxu0 0.0
        %1093 = vmatpush1.msra.mxu0 0.0
        %1094 = vmatprep.mubr.f32.mxu0 0.0
        %1095 = vmatmul.mubr.f32.gmra.mrb[0].mxu0 %v1028
        %v1096 = vpop.f32.mrb[0].mxu0
        %v1097 = vadd.f32 0.0, %v1096
        %v1098 = vpop.f32.mrb[0].mxu0
        %1099 = vdwg.mxu0
        %1100 = vxpose.xlu0.b32.start [1/16] %v830, 128
        %1101 = vxpose.xlu0.b32.cont [2/16] %v831, 128
        %1102 = vxpose.xlu0.b32.cont [3/16] 0.0, 128
        %1103 = vxpose.xlu0.b32.cont [4/16] 0.0, 128
        %1104 = vxpose.xlu0.b32.cont [5/16] 0.0, 128
        %1105 = vxpose.xlu0.b32.cont [6/16] 0.0, 128
        %1106 = vxpose.xlu0.b32.cont [7/16] 0.0, 128
        %1107 = vxpose.xlu0.b32.cont [8/16] 0.0, 128
        %1108 = vxpose.xlu0.b32.cont [9/16] 0.0, 128
        %1109 = vxpose.xlu0.b32.cont [10/16] 0.0, 128
        %1110 = vxpose.xlu0.b32.cont [11/16] 0.0, 128
        %1111 = vxpose.xlu0.b32.cont [12/16] 0.0, 128
        %1112 = vxpose.xlu0.b32.cont [13/16] 0.0, 128
        %1113 = vxpose.xlu0.b32.cont [14/16] 0.0, 128
        %1114 = vxpose.xlu0.b32.cont [15/16] 0.0, 128
        %1115 = vxpose.xlu0.b32.end [16/16] 0.0, 128
        %v1116 = vpop.trf.xlu0
        %v1117 = vpop.trf.xlu0
        %v1118 = vpop.trf.xlu0
        %v1119 = vpop.trf.xlu0
        %v1120 = vpop.trf.xlu0
        %v1121 = vpop.trf.xlu0
        %v1122 = vpop.trf.xlu0
        %v1123 = vpop.trf.xlu0
        %v1124 = vpop.trf.xlu0
        %v1125 = vpop.trf.xlu0
        %v1126 = vpop.trf.xlu0
        %v1127 = vpop.trf.xlu0
        %v1128 = vpop.trf.xlu0
        %v1129 = vpop.trf.xlu0
        %v1130 = vpop.trf.xlu0
        %v1131 = vpop.trf.xlu0
        %v1133 = vsel %vm1026, %v1116, 0
        %1135 = vmatprep.subr.mxu0 0.0
        %1136 = vmatpush1.msra.mxu0 %v537
        %1137 = vmatprep.subr.mxu0 0.0
        %1138 = vmatpush1.msra.mxu0 %v538
        %1139 = vmatprep.subr.mxu0 0.0
        %1140 = vmatpush1.msra.mxu0 0.0
        %1141 = vmatprep.subr.mxu0 0.0
        %1142 = vmatpush1.msra.mxu0 0.0
        %1143 = vmatprep.subr.mxu0 0.0
        %1144 = vmatpush1.msra.mxu0 0.0
        %1145 = vmatprep.subr.mxu0 0.0
        %1146 = vmatpush1.msra.mxu0 0.0
        %1147 = vmatprep.subr.mxu0 0.0
        %1148 = vmatpush1.msra.mxu0 0.0
        %1149 = vmatprep.subr.mxu0 0.0
        %1150 = vmatpush1.msra.mxu0 0.0
        %1151 = vmatprep.subr.mxu0 0.0
        %1152 = vmatpush1.msra.mxu0 0.0
        %1153 = vmatprep.subr.mxu0 0.0
        %1154 = vmatpush1.msra.mxu0 0.0
        %1155 = vmatprep.subr.mxu0 0.0
        %1156 = vmatpush1.msra.mxu0 0.0
        %1157 = vmatprep.subr.mxu0 0.0
        %1158 = vmatpush1.msra.mxu0 0.0
        %1159 = vmatprep.subr.mxu0 0.0
        %1160 = vmatpush1.msra.mxu0 0.0
        %1161 = vmatprep.subr.mxu0 0.0
        %1162 = vmatpush1.msra.mxu0 0.0
        %1163 = vmatprep.subr.mxu0 0.0
        %1164 = vmatpush1.msra.mxu0 0.0
        %1165 = vmatprep.subr.mxu0 0.0
        %1166 = vmatpush1.msra.mxu0 0.0
        %1167 = vmatprep.subr.mxu0 0.0
        %1168 = vmatpush1.msra.mxu0 0.0
        %1169 = vmatprep.subr.mxu0 0.0
        %1170 = vmatpush1.msra.mxu0 0.0
        %1171 = vmatprep.subr.mxu0 0.0
        %1172 = vmatpush1.msra.mxu0 0.0
        %1173 = vmatprep.subr.mxu0 0.0
        %1174 = vmatpush1.msra.mxu0 0.0
        %1175 = vmatprep.subr.mxu0 0.0
        %1176 = vmatpush1.msra.mxu0 0.0
        %1177 = vmatprep.subr.mxu0 0.0
        %1178 = vmatpush1.msra.mxu0 0.0
        %1179 = vmatprep.subr.mxu0 0.0
        %1180 = vmatpush1.msra.mxu0 0.0
        %1181 = vmatprep.subr.mxu0 0.0
        %1182 = vmatpush1.msra.mxu0 0.0
        %1183 = vmatprep.subr.mxu0 0.0
        %1184 = vmatpush1.msra.mxu0 0.0
        %1185 = vmatprep.subr.mxu0 0.0
        %1186 = vmatpush1.msra.mxu0 0.0
        %1187 = vmatprep.subr.mxu0 0.0
        %1188 = vmatpush1.msra.mxu0 0.0
        %1189 = vmatprep.subr.mxu0 0.0
        %1190 = vmatpush1.msra.mxu0 0.0
        %1191 = vmatprep.subr.mxu0 0.0
        %1192 = vmatpush1.msra.mxu0 0.0
        %1193 = vmatprep.subr.mxu0 0.0
        %1194 = vmatpush1.msra.mxu0 0.0
        %1195 = vmatprep.subr.mxu0 0.0
        %1196 = vmatpush1.msra.mxu0 0.0
        %1197 = vmatprep.subr.mxu0 0.0
        %1198 = vmatpush1.msra.mxu0 0.0
        %1199 = vmatprep.mubr.f32.mxu0 0.0
        %1200 = vmatmul.mubr.f32.gmra.mrb[0].mxu0 %v1133
        %v1201 = vpop.f32.mrb[0].mxu0
        %v1202 = vadd.f32 0.0, %v1201
        %v1203 = vpop.f32.mrb[0].mxu0
        %1204 = vdwg.mxu0
        %v1205 = vsub.f32 %v1097, %v629
        %v1206 = vsub.f32 %v1202, %v634
        %v1207 = vld [vmem:[#allocation8] sm:$0xff]
        %v1208 = vld [vmem:[#allocation8 + $0x8] sm:$0xff]
        %v1209 = vld [vmem:[#allocation8 + $0x10] sm:$0xff]
        %v1210 = vld [vmem:[#allocation8 + $0x18] sm:$0xff]
        %v1211 = vld [vmem:[#allocation8 + $0x20] sm:$0xff]
        %v1212 = vld [vmem:[#allocation8 + $0x28] sm:$0xff]
        %v1213 = vld [vmem:[#allocation8 + $0x30] sm:$0xff]
        %v1214 = vld [vmem:[#allocation8 + $0x38] sm:$0xff]
        %v1215 = vld [vmem:[#allocation8 + $0x40] sm:$0xff]
        %v1216 = vld [vmem:[#allocation8 + $0x48] sm:$0xff]
        %v1217 = vld [vmem:[#allocation8 + $0x50] sm:$0xff]
        %v1218 = vld [vmem:[#allocation8 + $0x58] sm:$0xff]
        %v1219 = vld [vmem:[#allocation8 + $0x60] sm:$0xff]
        %v1220 = vld [vmem:[#allocation8 + $0x68] sm:$0xff]
        %v1221 = vld [vmem:[#allocation8 + $0x70] sm:$0xff]
        %v1222 = vld [vmem:[#allocation8 + $0x78] sm:$0xff]
        %v1223 = vmul.f32 %v1097, %v629
        %v1224 = vmul.f32 %v1202, %v634
        %v1225 = vld [vmem:[#allocation10] sm:$0xff]
        %v1226 = vld [vmem:[#allocation10 + $0x8] sm:$0xff]
        %v1227 = vld [vmem:[#allocation10 + $0x10] sm:$0xff]
        %v1228 = vld [vmem:[#allocation10 + $0x18] sm:$0xff]
        %v1229 = vld [vmem:[#allocation10 + $0x20] sm:$0xff]
        %v1230 = vld [vmem:[#allocation10 + $0x28] sm:$0xff]
        %v1231 = vld [vmem:[#allocation10 + $0x30] sm:$0xff]
        %v1232 = vld [vmem:[#allocation10 + $0x38] sm:$0xff]
        %v1233 = vld [vmem:[#allocation10 + $0x40] sm:$0xff]
        %v1234 = vld [vmem:[#allocation10 + $0x48] sm:$0xff]
        %v1235 = vld [vmem:[#allocation10 + $0x50] sm:$0xff]
        %v1236 = vld [vmem:[#allocation10 + $0x58] sm:$0xff]
        %v1237 = vld [vmem:[#allocation10 + $0x60] sm:$0xff]
        %v1238 = vld [vmem:[#allocation10 + $0x68] sm:$0xff]
        %v1239 = vld [vmem:[#allocation10 + $0x70] sm:$0xff]
        %v1240 = vld [vmem:[#allocation10 + $0x78] sm:$0xff]
        %1241 = vmatprep.subr.mxu0 0.0
        %1242 = vmatpush1.msra.mxu0 %v1225
        %1243 = vmatprep.subr.mxu0 0.0
        %1244 = vmatpush1.msra.mxu0 %v1226
        %1245 = vmatprep.subr.mxu0 0.0
        %1246 = vmatpush1.msra.mxu0 %v1227
        %1247 = vmatprep.subr.mxu0 0.0
        %1248 = vmatpush1.msra.mxu0 %v1228
        %1249 = vmatprep.subr.mxu0 0.0
        %1250 = vmatpush1.msra.mxu0 %v1229
        %1251 = vmatprep.subr.mxu0 0.0
        %1252 = vmatpush1.msra.mxu0 %v1230
        %1253 = vmatprep.subr.mxu0 0.0
        %1254 = vmatpush1.msra.mxu0 %v1231
        %1255 = vmatprep.subr.mxu0 0.0
        %1256 = vmatpush1.msra.mxu0 %v1232
        %1257 = vmatprep.subr.mxu0 0.0
        %1258 = vmatpush1.msra.mxu0 %v1233
        %1259 = vmatprep.subr.mxu0 0.0
        %1260 = vmatpush1.msra.mxu0 %v1234
        %1261 = vmatprep.subr.mxu0 0.0
        %1262 = vmatpush1.msra.mxu0 %v1235
        %1263 = vmatprep.subr.mxu0 0.0
        %1264 = vmatpush1.msra.mxu0 %v1236
        %1265 = vmatprep.subr.mxu0 0.0
        %1266 = vmatpush1.msra.mxu0 %v1237
        %1267 = vmatprep.subr.mxu0 0.0
        %1268 = vmatpush1.msra.mxu0 %v1238
        %1269 = vmatprep.subr.mxu0 0.0
        %1270 = vmatpush1.msra.mxu0 %v1239
        %1271 = vmatprep.subr.mxu0 0.0
        %1272 = vmatpush1.msra.mxu0 %v1240
        %1273 = vmatprep.subr.mxu0 0.0
        %1274 = vmatpush1.msra.mxu0 0.0
        %1275 = vmatprep.subr.mxu0 0.0
        %1276 = vmatpush1.msra.mxu0 0.0
        %1277 = vmatprep.subr.mxu0 0.0
        %1278 = vmatpush1.msra.mxu0 0.0
        %1279 = vmatprep.subr.mxu0 0.0
        %1280 = vmatpush1.msra.mxu0 0.0
        %1281 = vmatprep.subr.mxu0 0.0
        %1282 = vmatpush1.msra.mxu0 0.0
        %1283 = vmatprep.subr.mxu0 0.0
        %1284 = vmatpush1.msra.mxu0 0.0
        %1285 = vmatprep.subr.mxu0 0.0
        %1286 = vmatpush1.msra.mxu0 0.0
        %1287 = vmatprep.subr.mxu0 0.0
        %1288 = vmatpush1.msra.mxu0 0.0
        %1289 = vmatprep.subr.mxu0 0.0
        %1290 = vmatpush1.msra.mxu0 0.0
        %1291 = vmatprep.subr.mxu0 0.0
        %1292 = vmatpush1.msra.mxu0 0.0
        %1293 = vmatprep.subr.mxu0 0.0
        %1294 = vmatpush1.msra.mxu0 0.0
        %1295 = vmatprep.subr.mxu0 0.0
        %1296 = vmatpush1.msra.mxu0 0.0
        %1297 = vmatprep.subr.mxu0 0.0
        %1298 = vmatpush1.msra.mxu0 0.0
        %1299 = vmatprep.subr.mxu0 0.0
        %1300 = vmatpush1.msra.mxu0 0.0
        %1301 = vmatprep.subr.mxu0 0.0
        %1302 = vmatpush1.msra.mxu0 0.0
        %1303 = vmatprep.subr.mxu0 0.0
        %1304 = vmatpush1.msra.mxu0 0.0
        %1305 = vmatprep.mubr.f32.mxu0 0.0
        %1306 = vmatmul.mubr.f32.gmra.mrb[0].mxu0 %v1223
        %v1307 = vpop.f32.mrb[0].mxu0
        %v1308 = vadd.f32 0.0, %v1307
        %v1309 = vpop.f32.mrb[0].mxu0
        %1310 = vmatprep.mubr.f32.mxu0 0.0
        %1311 = vmatmul.mubr.f32.gmra.mrb[0].mxu0 %v1224
        %v1312 = vpop.f32.mrb[0].mxu0
        %v1313 = vadd.f32 0.0, %v1312
        %v1314 = vpop.f32.mrb[0].mxu0
        %1315 = vdwg.mxu0
        %1316 = vmatprep.subr.mxu0 0.0
        %1317 = vmatpush1.msra.mxu0 %v1207
        %1318 = vmatprep.subr.mxu0 0.0
        %1319 = vmatpush1.msra.mxu0 %v1208
        %1320 = vmatprep.subr.mxu0 0.0
        %1321 = vmatpush1.msra.mxu0 %v1209
        %1322 = vmatprep.subr.mxu0 0.0
        %1323 = vmatpush1.msra.mxu0 %v1210
        %1324 = vmatprep.subr.mxu0 0.0
        %1325 = vmatpush1.msra.mxu0 %v1211
        %1326 = vmatprep.subr.mxu0 0.0
        %1327 = vmatpush1.msra.mxu0 %v1212
        %1328 = vmatprep.subr.mxu0 0.0
        %1329 = vmatpush1.msra.mxu0 %v1213
        %1330 = vmatprep.subr.mxu0 0.0
        %1331 = vmatpush1.msra.mxu0 %v1214
        %1332 = vmatprep.subr.mxu0 0.0
        %1333 = vmatpush1.msra.mxu0 %v1215
        %1334 = vmatprep.subr.mxu0 0.0
        %1335 = vmatpush1.msra.mxu0 %v1216
        %1336 = vmatprep.subr.mxu0 0.0
        %1337 = vmatpush1.msra.mxu0 %v1217
        %1338 = vmatprep.subr.mxu0 0.0
        %1339 = vmatpush1.msra.mxu0 %v1218
        %1340 = vmatprep.subr.mxu0 0.0
        %1341 = vmatpush1.msra.mxu0 %v1219
        %1342 = vmatprep.subr.mxu0 0.0
        %1343 = vmatpush1.msra.mxu0 %v1220
        %1344 = vmatprep.subr.mxu0 0.0
        %1345 = vmatpush1.msra.mxu0 %v1221
        %1346 = vmatprep.subr.mxu0 0.0
        %1347 = vmatpush1.msra.mxu0 %v1222
        %1348 = vmatprep.subr.mxu0 0.0
        %1349 = vmatpush1.msra.mxu0 0.0
        %1350 = vmatprep.subr.mxu0 0.0
        %1351 = vmatpush1.msra.mxu0 0.0
        %1352 = vmatprep.subr.mxu0 0.0
        %1353 = vmatpush1.msra.mxu0 0.0
        %1354 = vmatprep.subr.mxu0 0.0
        %1355 = vmatpush1.msra.mxu0 0.0
        %1356 = vmatprep.subr.mxu0 0.0
        %1357 = vmatpush1.msra.mxu0 0.0
        %1358 = vmatprep.subr.mxu0 0.0
        %1359 = vmatpush1.msra.mxu0 0.0
        %1360 = vmatprep.subr.mxu0 0.0
        %1361 = vmatpush1.msra.mxu0 0.0
        %1362 = vmatprep.subr.mxu0 0.0
        %1363 = vmatpush1.msra.mxu0 0.0
        %1364 = vmatprep.subr.mxu0 0.0
        %1365 = vmatpush1.msra.mxu0 0.0
        %1366 = vmatprep.subr.mxu0 0.0
        %1367 = vmatpush1.msra.mxu0 0.0
        %1368 = vmatprep.subr.mxu0 0.0
        %1369 = vmatpush1.msra.mxu0 0.0
        %1370 = vmatprep.subr.mxu0 0.0
        %1371 = vmatpush1.msra.mxu0 0.0
        %1372 = vmatprep.subr.mxu0 0.0
        %1373 = vmatpush1.msra.mxu0 0.0
        %1374 = vmatprep.subr.mxu0 0.0
        %1375 = vmatpush1.msra.mxu0 0.0
        %1376 = vmatprep.subr.mxu0 0.0
        %1377 = vmatpush1.msra.mxu0 0.0
        %1378 = vmatprep.subr.mxu0 0.0
        %1379 = vmatpush1.msra.mxu0 0.0
        %1380 = vmatprep.mubr.f32.mxu0 0.0
        %1381 = vmatmul.mubr.f32.gmra.mrb[0].mxu0 %v1205
        %v1382 = vpop.f32.mrb[0].mxu0
        %v1383 = vadd.f32 %v1308, %v1382
        %v1384 = vpop.f32.mrb[0].mxu0
        %1385 = vmatprep.mubr.f32.mxu0 0.0
        %1386 = vmatmul.mubr.f32.gmra.mrb[0].mxu0 %v1206
        %v1387 = vpop.f32.mrb[0].mxu0
        %v1388 = vadd.f32 %v1313, %v1387
        %v1389 = vpop.f32.mrb[0].mxu0
        %1390 = vdwg.mxu0
        %v1391 = vld [vmem:[%s6] sm:$0x1]
        %v1393 = vlaneseq
        %v1394 = vshrl.u32 %v1393, 7
        %v1395 = vsub.s32 0, %v1394
        %v1396 = vrot.slane %v1391, %v1395
        %v1398 = vadd.f32 %v1383, %v1396
        %v1399 = vadd.f32 %v1388, %v1396
        %v1400 = vmax.f32 %v1398, 0.0
        %v1401 = vmax.f32 %v1399, 0.0
        %v1402 = vsub.f32 %v905, %v535
        %v1403 = vsub.f32 %v910, %v536
        %v1404 = vsub.f32 %v986, %v537
        %v1405 = vsub.f32 %v991, %v538
        %v1406 = vld [vmem:[#allocation11] sm:$0xff]
        %v1407 = vld [vmem:[#allocation11 + $0x8] sm:$0xff]
        %v1408 = vld [vmem:[#allocation11 + $0x10] sm:$0xff]
        %v1409 = vld [vmem:[#allocation11 + $0x18] sm:$0xff]
        %v1410 = vld [vmem:[#allocation11 + $0x20] sm:$0xff]
        %v1411 = vld [vmem:[#allocation11 + $0x28] sm:$0xff]
        %v1412 = vld [vmem:[#allocation11 + $0x30] sm:$0xff]
        %v1413 = vld [vmem:[#allocation11 + $0x38] sm:$0xff]
        %v1414 = vld [vmem:[#allocation11 + $0x40] sm:$0xff]
        %v1415 = vld [vmem:[#allocation11 + $0x48] sm:$0xff]
        %v1416 = vld [vmem:[#allocation11 + $0x50] sm:$0xff]
        %v1417 = vld [vmem:[#allocation11 + $0x58] sm:$0xff]
        %v1418 = vld [vmem:[#allocation11 + $0x60] sm:$0xff]
        %v1419 = vld [vmem:[#allocation11 + $0x68] sm:$0xff]
        %v1420 = vld [vmem:[#allocation11 + $0x70] sm:$0xff]
        %v1421 = vld [vmem:[#allocation11 + $0x78] sm:$0xff]
        %v1422 = vmul.f32 %v905, %v535
        %v1423 = vmul.f32 %v910, %v536
        %v1424 = vmul.f32 %v986, %v537
        %v1425 = vmul.f32 %v991, %v538
        %v1426 = vld [vmem:[#allocation13] sm:$0xff]
        %v1427 = vld [vmem:[#allocation13 + $0x8] sm:$0xff]
        %v1428 = vld [vmem:[#allocation13 + $0x10] sm:$0xff]
        %v1429 = vld [vmem:[#allocation13 + $0x18] sm:$0xff]
        %v1430 = vld [vmem:[#allocation13 + $0x20] sm:$0xff]
        %v1431 = vld [vmem:[#allocation13 + $0x28] sm:$0xff]
        %v1432 = vld [vmem:[#allocation13 + $0x30] sm:$0xff]
        %v1433 = vld [vmem:[#allocation13 + $0x38] sm:$0xff]
        %v1434 = vld [vmem:[#allocation13 + $0x40] sm:$0xff]
        %v1435 = vld [vmem:[#allocation13 + $0x48] sm:$0xff]
        %v1436 = vld [vmem:[#allocation13 + $0x50] sm:$0xff]
        %v1437 = vld [vmem:[#allocation13 + $0x58] sm:$0xff]
        %v1438 = vld [vmem:[#allocation13 + $0x60] sm:$0xff]
        %v1439 = vld [vmem:[#allocation13 + $0x68] sm:$0xff]
        %v1440 = vld [vmem:[#allocation13 + $0x70] sm:$0xff]
        %v1441 = vld [vmem:[#allocation13 + $0x78] sm:$0xff]
        %1442 = vmatprep.subr.mxu0 0.0
        %1443 = vmatpush1.msra.mxu0 %v1426
        %1444 = vmatprep.subr.mxu0 0.0
        %1445 = vmatpush1.msra.mxu0 %v1427
        %1446 = vmatprep.subr.mxu0 0.0
        %1447 = vmatpush1.msra.mxu0 %v1428
        %1448 = vmatprep.subr.mxu0 0.0
        %1449 = vmatpush1.msra.mxu0 %v1429
        %1450 = vmatprep.subr.mxu0 0.0
        %1451 = vmatpush1.msra.mxu0 %v1430
        %1452 = vmatprep.subr.mxu0 0.0
        %1453 = vmatpush1.msra.mxu0 %v1431
        %1454 = vmatprep.subr.mxu0 0.0
        %1455 = vmatpush1.msra.mxu0 %v1432
        %1456 = vmatprep.subr.mxu0 0.0
        %1457 = vmatpush1.msra.mxu0 %v1433
        %1458 = vmatprep.subr.mxu0 0.0
        %1459 = vmatpush1.msra.mxu0 %v1434
        %1460 = vmatprep.subr.mxu0 0.0
        %1461 = vmatpush1.msra.mxu0 %v1435
        %1462 = vmatprep.subr.mxu0 0.0
        %1463 = vmatpush1.msra.mxu0 %v1436
        %1464 = vmatprep.subr.mxu0 0.0
        %1465 = vmatpush1.msra.mxu0 %v1437
        %1466 = vmatprep.subr.mxu0 0.0
        %1467 = vmatpush1.msra.mxu0 %v1438
        %1468 = vmatprep.subr.mxu0 0.0
        %1469 = vmatpush1.msra.mxu0 %v1439
        %1470 = vmatprep.subr.mxu0 0.0
        %1471 = vmatpush1.msra.mxu0 %v1440
        %1472 = vmatprep.subr.mxu0 0.0
        %1473 = vmatpush1.msra.mxu0 %v1441
        %1474 = vmatprep.subr.mxu0 0.0
        %1475 = vmatpush1.msra.mxu0 0.0
        %1476 = vmatprep.subr.mxu0 0.0
        %1477 = vmatpush1.msra.mxu0 0.0
        %1478 = vmatprep.subr.mxu0 0.0
        %1479 = vmatpush1.msra.mxu0 0.0
        %1480 = vmatprep.subr.mxu0 0.0
        %1481 = vmatpush1.msra.mxu0 0.0
        %1482 = vmatprep.subr.mxu0 0.0
        %1483 = vmatpush1.msra.mxu0 0.0
        %1484 = vmatprep.subr.mxu0 0.0
        %1485 = vmatpush1.msra.mxu0 0.0
        %1486 = vmatprep.subr.mxu0 0.0
        %1487 = vmatpush1.msra.mxu0 0.0
        %1488 = vmatprep.subr.mxu0 0.0
        %1489 = vmatpush1.msra.mxu0 0.0
        %1490 = vmatprep.subr.mxu0 0.0
        %1491 = vmatpush1.msra.mxu0 0.0
        %1492 = vmatprep.subr.mxu0 0.0
        %1493 = vmatpush1.msra.mxu0 0.0
        %1494 = vmatprep.subr.mxu0 0.0
        %1495 = vmatpush1.msra.mxu0 0.0
        %1496 = vmatprep.subr.mxu0 0.0
        %1497 = vmatpush1.msra.mxu0 0.0
        %1498 = vmatprep.subr.mxu0 0.0
        %1499 = vmatpush1.msra.mxu0 0.0
        %1500 = vmatprep.subr.mxu0 0.0
        %1501 = vmatpush1.msra.mxu0 0.0
        %1502 = vmatprep.subr.mxu0 0.0
        %1503 = vmatpush1.msra.mxu0 0.0
        %1504 = vmatprep.subr.mxu0 0.0
        %1505 = vmatpush1.msra.mxu0 0.0
        %1506 = vmatprep.mubr.f32.mxu0 0.0
        %1507 = vmatmul.mubr.f32.gmra.mrb[0].mxu0 %v1422
        %v1508 = vpop.f32.mrb[0].mxu0
        %v1509 = vadd.f32 0.0, %v1508
        %v1510 = vpop.f32.mrb[0].mxu0
        %1511 = vmatprep.mubr.f32.mxu0 0.0
        %1512 = vmatmul.mubr.f32.gmra.mrb[0].mxu0 %v1423
        %v1513 = vpop.f32.mrb[0].mxu0
        %v1514 = vadd.f32 0.0, %v1513
        %v1515 = vpop.f32.mrb[0].mxu0
        %1516 = vmatprep.mubr.f32.mxu0 0.0
        %1517 = vmatmul.mubr.f32.gmra.mrb[0].mxu0 %v1424
        %v1518 = vpop.f32.mrb[0].mxu0
        %v1519 = vadd.f32 0.0, %v1518
        %v1520 = vpop.f32.mrb[0].mxu0
        %1521 = vmatprep.mubr.f32.mxu0 0.0
        %1522 = vmatmul.mubr.f32.gmra.mrb[0].mxu0 %v1425
        %v1523 = vpop.f32.mrb[0].mxu0
        %v1524 = vadd.f32 0.0, %v1523
        %v1525 = vpop.f32.mrb[0].mxu0
        %1526 = vdwg.mxu0
        %1527 = vmatprep.subr.mxu0 0.0
        %1528 = vmatpush1.msra.mxu0 %v1406
        %1529 = vmatprep.subr.mxu0 0.0
        %1530 = vmatpush1.msra.mxu0 %v1407
        %1531 = vmatprep.subr.mxu0 0.0
        %1532 = vmatpush1.msra.mxu0 %v1408
        %1533 = vmatprep.subr.mxu0 0.0
        %1534 = vmatpush1.msra.mxu0 %v1409
        %1535 = vmatprep.subr.mxu0 0.0
        %1536 = vmatpush1.msra.mxu0 %v1410
        %1537 = vmatprep.subr.mxu0 0.0
        %1538 = vmatpush1.msra.mxu0 %v1411
        %1539 = vmatprep.subr.mxu0 0.0
        %1540 = vmatpush1.msra.mxu0 %v1412
        %1541 = vmatprep.subr.mxu0 0.0
        %1542 = vmatpush1.msra.mxu0 %v1413
        %1543 = vmatprep.subr.mxu0 0.0
        %1544 = vmatpush1.msra.mxu0 %v1414
        %1545 = vmatprep.subr.mxu0 0.0
        %1546 = vmatpush1.msra.mxu0 %v1415
        %1547 = vmatprep.subr.mxu0 0.0
        %1548 = vmatpush1.msra.mxu0 %v1416
        %1549 = vmatprep.subr.mxu0 0.0
        %1550 = vmatpush1.msra.mxu0 %v1417
        %1551 = vmatprep.subr.mxu0 0.0
        %1552 = vmatpush1.msra.mxu0 %v1418
        %1553 = vmatprep.subr.mxu0 0.0
        %1554 = vmatpush1.msra.mxu0 %v1419
        %1555 = vmatprep.subr.mxu0 0.0
        %1556 = vmatpush1.msra.mxu0 %v1420
        %1557 = vmatprep.subr.mxu0 0.0
        %1558 = vmatpush1.msra.mxu0 %v1421
        %1559 = vmatprep.subr.mxu0 0.0
        %1560 = vmatpush1.msra.mxu0 0.0
        %1561 = vmatprep.subr.mxu0 0.0
        %1562 = vmatpush1.msra.mxu0 0.0
        %1563 = vmatprep.subr.mxu0 0.0
        %1564 = vmatpush1.msra.mxu0 0.0
        %1565 = vmatprep.subr.mxu0 0.0
        %1566 = vmatpush1.msra.mxu0 0.0
        %1567 = vmatprep.subr.mxu0 0.0
        %1568 = vmatpush1.msra.mxu0 0.0
        %1569 = vmatprep.subr.mxu0 0.0
        %1570 = vmatpush1.msra.mxu0 0.0
        %1571 = vmatprep.subr.mxu0 0.0
        %1572 = vmatpush1.msra.mxu0 0.0
        %1573 = vmatprep.subr.mxu0 0.0
        %1574 = vmatpush1.msra.mxu0 0.0
        %1575 = vmatprep.subr.mxu0 0.0
        %1576 = vmatpush1.msra.mxu0 0.0
        %1577 = vmatprep.subr.mxu0 0.0
        %1578 = vmatpush1.msra.mxu0 0.0
        %1579 = vmatprep.subr.mxu0 0.0
        %1580 = vmatpush1.msra.mxu0 0.0
        %1581 = vmatprep.subr.mxu0 0.0
        %1582 = vmatpush1.msra.mxu0 0.0
        %1583 = vmatprep.subr.mxu0 0.0
        %1584 = vmatpush1.msra.mxu0 0.0
        %1585 = vmatprep.subr.mxu0 0.0
        %1586 = vmatpush1.msra.mxu0 0.0
        %1587 = vmatprep.subr.mxu0 0.0
        %1588 = vmatpush1.msra.mxu0 0.0
        %1589 = vmatprep.subr.mxu0 0.0
        %1590 = vmatpush1.msra.mxu0 0.0
        %1591 = vmatprep.mubr.f32.mxu0 0.0
        %1592 = vmatmul.mubr.f32.gmra.mrb[0].mxu0 %v1402
        %v1593 = vpop.f32.mrb[0].mxu0
        %v1594 = vadd.f32 %v1509, %v1593
        %v1595 = vpop.f32.mrb[0].mxu0
        %1596 = vmatprep.mubr.f32.mxu0 0.0
        %1597 = vmatmul.mubr.f32.gmra.mrb[0].mxu0 %v1403
        %v1598 = vpop.f32.mrb[0].mxu0
        %v1599 = vadd.f32 %v1514, %v1598
        %v1600 = vpop.f32.mrb[0].mxu0
        %1601 = vmatprep.mubr.f32.mxu0 0.0
        %1602 = vmatmul.mubr.f32.gmra.mrb[0].mxu0 %v1404
        %v1603 = vpop.f32.mrb[0].mxu0
        %v1604 = vadd.f32 %v1519, %v1603
        %v1605 = vpop.f32.mrb[0].mxu0
        %1606 = vmatprep.mubr.f32.mxu0 0.0
        %1607 = vmatmul.mubr.f32.gmra.mrb[0].mxu0 %v1405
        %v1608 = vpop.f32.mrb[0].mxu0
        %v1609 = vadd.f32 %v1524, %v1608
        %v1610 = vpop.f32.mrb[0].mxu0
        %1611 = vdwg.mxu0
        %v1612 = vld [vmem:[%s9] sm:$0x1]
        %v1614 = vlaneseq
        %v1615 = vshrl.u32 %v1614, 7
        %v1616 = vsub.s32 0, %v1615
        %v1617 = vrot.slane %v1612, %v1616
        %v1619 = vadd.f32 %v1594, %v1617
        %v1620 = vadd.f32 %v1599, %v1617
        %v1621 = vadd.f32 %v1604, %v1617
        %v1622 = vadd.f32 %v1609, %v1617
        %v1623 = vmax.f32 %v1619, 0.0
        %v1624 = vmax.f32 %v1620, 0.0
        %v1625 = vmax.f32 %v1621, 0.0
        %v1626 = vmax.f32 %v1622, 0.0
        %1627 = vst [vmem:[%s521] sm:$0xff] %v1400
        %1628 = vst [vmem:[%s521 + $0x8] sm:$0xff] %v1401
        %1629 = vst [vmem:[%s528] sm:$0xff] %v1623
        %1630 = vst [vmem:[%s528 + $0x8] sm:$0xff] %v1624
        %1631 = vst [vmem:[%s528 + $0x10] sm:$0xff] %v1625
        %1632 = vst [vmem:[%s528 + $0x18] sm:$0xff] %v1626
        %s1633 = sand.u32 %s265, 1
        %s1634 = scalar_lea.sflag [#allocation4], %s1633
        %s1635 = sand.u32 %s265, 1
        %s1636 = smul.addr %s1635, 16
        %s1637 = scalar_lea.vmem [#allocation14], %s1636
        %s1638 = sand.u32 %s291, 1
        %s1639 = scalar_lea.sflag [#allocation16], %s1638
        %s1640 = sand.u32 %s291, 1
        %s1641 = smul.addr %s1640, 32
        %s1642 = scalar_lea.vmem [#allocation15], %s1641
        // Predicated region
        $region89: #{tpu_custom_call.1} parent=59 // pred_check
          %p1643 = pneg %p275
        $region90: #{tpu_custom_call.1} parent=59 // pred_check_branch
          %1645 = sbr.rel (%p1643) target = $region92
        $region91: #{tpu_custom_call.1} parent=59 // pred_region
          %s1646 = smul.u32 2, %s37
          %s1648 = ssub.s32 256, 256
          %1649 = vsyncadd %s1634, %s1648
          %s1650 = smul.addr %s1646, 128
          %s1651 = scalar_lea.hbm %s10, %s1650
          %s1652 = sshll.u32 %s1637, 4
          %s1653 = int_to_ptr.vmem [resolvable:$true] %s1652
          %1658 = dma.vmem_to_hbm [thread:$0]  %s1653, 256, %s1651, %s1634, 128, 128, 8
        $region92: #{tpu_custom_call.1} parent=59 // pred_fallthru
          _
        // Predicated region
        $region93: #{tpu_custom_call.1} parent=59 // pred_check
          %p1659 = pneg %p301
        $region94: #{tpu_custom_call.1} parent=59 // pred_check_branch
          %1661 = sbr.rel (%p1659) target = $region96
        $region95: #{tpu_custom_call.1} parent=59 // pred_region
          %s1662 = smul.u32 2, %s37
          %s1664 = ssub.s32 512, 512
          %1665 = vsyncadd %s1639, %s1664
          %s1666 = smul.addr %s1662, 2
          %s1667 = smul.addr %s1666, 128
          %s1668 = scalar_lea.hbm %s11, %s1667
          %s1669 = sshll.u32 %s1642, 4
          %s1670 = int_to_ptr.vmem [resolvable:$true] %s1669
          %1675 = dma.vmem_to_hbm [thread:$0]  %s1670, 512, %s1668, %s1639, 128, 128, 8
        $region96: #{tpu_custom_call.1} parent=59 // pred_fallthru
          _
      $region60: #{tpu_custom_call.1} parent=5 // pred_fallthru
        _
      %p1676 = scmp.le.s32.totalorder 2, %s32
      // Predicated region
      $region97: #{tpu_custom_call.1} parent=5 // pred_check
        %p1677 = pneg %p1676
      $region98: #{tpu_custom_call.1} parent=5 // pred_check_branch
        %1679 = sbr.rel (%p1677) target = $region100
      $region99: #{tpu_custom_call.1} parent=5 // pred_region
        %s1680 = ssub.s32 %s32, 2
        // Predicated region
        $region101: #{tpu_custom_call.1} parent=99 // pred_check
          %p1681 = pneg %p281
        $region102: #{tpu_custom_call.1} parent=99 // pred_check_branch
          %1683 = sbr.rel (%p1681) target = $region104
        $region103: #{tpu_custom_call.1} parent=99 // pred_region
          %s1684 = sand.u32 %s266, 1
          %s1685 = scalar_lea.sflag [#allocation4], %s1684
          %s1686 = sand.u32 %s266, 1
          %s1687 = smul.addr %s1686, 16
          %s1688 = scalar_lea.vmem [#allocation14], %s1687
          %1689 = dma.done %s1685, 256
        $region104: #{tpu_custom_call.1} parent=99 // pred_fallthru
          _
        // Predicated region
        $region105: #{tpu_custom_call.1} parent=99 // pred_check
          %p1690 = pneg %p307
        $region106: #{tpu_custom_call.1} parent=99 // pred_check_branch
          %1692 = sbr.rel (%p1690) target = $region108
        $region107: #{tpu_custom_call.1} parent=99 // pred_region
          %s1693 = sand.u32 %s292, 1
          %s1694 = scalar_lea.sflag [#allocation16], %s1693
          %s1695 = sand.u32 %s292, 1
          %s1696 = smul.addr %s1695, 32
          %s1697 = scalar_lea.vmem [#allocation15], %s1696
          %1698 = dma.done %s1694, 512
        $region108: #{tpu_custom_call.1} parent=99 // pred_fallthru
          _
      $region100: #{tpu_custom_call.1} parent=5 // pred_fallthru
        _
    $region6: #{tpu_custom_call.1} parent=1 // loop_footer
      %s36 = sadd.s32 1, %s32
    $region7: #{tpu_custom_call.1} parent=1 // loop_footer_branch
      %31 = sbr.rel target = $region3
    $region8: #{tpu_custom_call.1} parent=1 // loop_exit
      _
    %1699 = vsyncpa [#allocation3], 1
    %s1700 = scalar_lea.sflag [#allocation3], 1
    %1701 = vsyncpa %s1700, 1
    %1702 = vsyncpa [#allocation6], 1
    %s1703 = scalar_lea.sflag [#allocation6], 1
    %1704 = vsyncpa %s1703, 1
    %1705 = vsyncpa [#allocation9], 1
    %1706 = vsyncpa [#allocation12], 1
    %1707 = vsyncpa [#allocation4], 1
    %s1708 = scalar_lea.sflag [#allocation4], 1
    %1709 = vsyncpa %s1708, 1
    %1710 = vsyncpa [#allocation16], 1
    %s1711 = scalar_lea.sflag [#allocation16], 1
    %1712 = vsyncpa %s1711, 1

</llo_original>
